<compile_context>
chip_gen: v6e
topology: v6e:2x2x1
jax: 0.10.0
libtpu: 0.0.40
codegen_flags: <defaults>
</compile_context>

<pallas_src>
import jax
import jax.numpy as jnp
from jax.experimental import pallas as pl
from jax.experimental.pallas import tpu as pltpu

EMBED = 32
HEADS = 4
HEAD_DIM = EMBED // HEADS
SEQ = 8
EXPANSION = 4
FF = EMBED * EXPANSION
EPS = 1e-5


def transformer_block_kernel(v_ref, k_ref, q_ref, we_ref, wf_ref, out_ref):
    B, L, E = q_ref.shape                 # batch tile, seq len, embed
    H = HEADS
    D = E // H
    BL = B * L
    F = wf_ref.shape[1]

    # ---- unpack weight slabs (static, sublane-aligned slices of resident VMEM) ----
    wq = we_ref[0:E, :]                   # (E, E)  kron(I_H, Wq^T) * 1/sqrt(E)
    wk = we_ref[E:2 * E, :]               # (E, E)  kron(I_H, Wk^T)
    wv = we_ref[2 * E:3 * E, :]           # (E, E)  kron(I_H, Wv^T)
    wo = we_ref[3 * E:4 * E, :]           # (E, E)  Wo^T
    w2 = we_ref[4 * E:4 * E + F, :]       # (F, E)  W2^T
    w1 = wf_ref[0:E, :]                   # (E, F)  W1^T
    vecs = wf_ref[E:E + 8, :]             # (8, F)  rows: b1, bo, g1, be1, g2, be2, b2, 0

    q2 = q_ref[...].reshape(BL, E)
    k2 = k_ref[...].reshape(BL, E)
    v2 = v_ref[...].reshape(BL, E)

    # ---- Q/K/V projections in E-space (block-diagonal weights, single matmuls) ----
    qp = jnp.dot(q2, wq, preferred_element_type=jnp.float32).reshape(B, L, E)
    kp = jnp.dot(k2, wk, preferred_element_type=jnp.float32).reshape(B, L, E)
    vp = jnp.dot(v2, wv, preferred_element_type=jnp.float32).reshape(B, L, E)

    # ---- attention: head split (D-wide lane slices) only where it is required ----
    ctx_heads = []
    for h in range(H):
        sl = slice(h * D, (h + 1) * D)
        e = jnp.einsum('bqd,bkd->bqk', qp[:, :, sl], kp[:, :, sl],
                       preferred_element_type=jnp.float32)        # (B, L, L), scale folded
        m = jnp.max(e, axis=-1, keepdims=True)
        p = jnp.exp(e - m)
        s = jnp.sum(p, axis=-1, keepdims=True)
        a = p * pl.reciprocal(s, approx=True)                     # EUP reciprocal
        ctx_heads.append(jnp.einsum('bqk,bkd->bqd', a, vp[:, :, sl],
                                    preferred_element_type=jnp.float32))
    ctx = jnp.concatenate(ctx_heads, axis=-1).reshape(BL, E)       # (B*L, E), head-major lanes

    # ---- fc_out: one (B*L, E) x (E, E) matmul ----
    bo = vecs[1:2, :E]
    attn = jnp.dot(ctx, wo, preferred_element_type=jnp.float32) + bo

    # TODO(synk): dropout is a no-op (inference semantics); training-mode dropout would need
    # pltpu.prng_* random bits.  The mask=None attention path is hardcoded.

    # ---- residual + LayerNorm 1 (centered variance) ----
    g1, be1 = vecs[2:3, :E], vecs[3:4, :E]
    x = attn + q2
    mu = jnp.mean(x, axis=-1, keepdims=True)
    xc = x - mu
    var = jnp.mean(xc * xc, axis=-1, keepdims=True)
    x = xc * jax.lax.rsqrt(var + EPS) * g1 + be1

    # ---- feed forward: Linear -> ReLU -> Linear ----
    b1 = vecs[0:1, :]
    b2 = vecs[6:7, :E]
    h1 = jnp.maximum(jnp.dot(x, w1, preferred_element_type=jnp.float32) + b1, 0.0)
    f = jnp.dot(h1, w2, preferred_element_type=jnp.float32) + b2

    # ---- residual + LayerNorm 2 ----
    g2, be2 = vecs[4:5, :E], vecs[5:6, :E]
    y = f + x
    mu2 = jnp.mean(y, axis=-1, keepdims=True)
    yc = y - mu2
    var2 = jnp.mean(yc * yc, axis=-1, keepdims=True)
    out = yc * jax.lax.rsqrt(var2 + EPS) * g2 + be2                # (B*L, E)

    out_ref[...] = out.reshape(B, L, E).astype(out_ref.dtype)


def init_params(key):
    ks = jax.random.split(key, 13)
    D, E, F = HEAD_DIM, EMBED, FF
    return {
        "wv": jax.random.normal(ks[0], (D, D), jnp.float32) * 0.2,
        "wk": jax.random.normal(ks[1], (D, D), jnp.float32) * 0.2,
        "wq": jax.random.normal(ks[2], (D, D), jnp.float32) * 0.2,
        "wo": jax.random.normal(ks[3], (E, E), jnp.float32) * 0.1,
        "bo": jax.random.normal(ks[4], (1, E), jnp.float32) * 0.05,
        "w1": jax.random.normal(ks[5], (F, E), jnp.float32) * 0.1,
        "b1": jax.random.normal(ks[6], (1, F), jnp.float32) * 0.05,
        "w2": jax.random.normal(ks[7], (E, F), jnp.float32) * 0.1,
        "b2": jax.random.normal(ks[8], (1, E), jnp.float32) * 0.05,
        "g1": 1.0 + jax.random.normal(ks[9], (1, E), jnp.float32) * 0.05,
        "be1": jax.random.normal(ks[10], (1, E), jnp.float32) * 0.05,
        "g2": 1.0 + jax.random.normal(ks[11], (1, E), jnp.float32) * 0.05,
        "be2": jax.random.normal(ks[12], (1, E), jnp.float32) * 0.05,
    }


def pack_params(params):
    """One-time weight packing (hoisted out of the forward path).

    Returns:
      we: (4*E + FF, E) slab = [kron(I_H, Wq^T)/sqrt(E); kron(I_H, Wk^T); kron(I_H, Wv^T);
                                Wo^T; W2^T]
      wf: (E + 8, FF) slab  = [W1^T; bias/gain rows (b1, bo, g1, be1, g2, be2, b2, 0)]
    """
    E, H, F = EMBED, HEADS, FF
    eye = jnp.eye(H, dtype=jnp.float32)
    inv_scale = 1.0 / jnp.sqrt(jnp.float32(E))
    wq_bd = jnp.kron(eye, params["wq"].T) * inv_scale     # (E, E) block-diagonal
    wk_bd = jnp.kron(eye, params["wk"].T)
    wv_bd = jnp.kron(eye, params["wv"].T)
    we = jnp.concatenate([wq_bd, wk_bd, wv_bd, params["wo"].T, params["w2"].T], axis=0)

    vecs = jnp.zeros((8, F), jnp.float32)
    vecs = vecs.at[0, :].set(params["b1"].reshape(-1))
    vecs = vecs.at[1, :E].set(params["bo"].reshape(-1))
    vecs = vecs.at[2, :E].set(params["g1"].reshape(-1))
    vecs = vecs.at[3, :E].set(params["be1"].reshape(-1))
    vecs = vecs.at[4, :E].set(params["g2"].reshape(-1))
    vecs = vecs.at[5, :E].set(params["be2"].reshape(-1))
    vecs = vecs.at[6, :E].set(params["b2"].reshape(-1))
    wf = jnp.concatenate([params["w1"].T, vecs], axis=0)   # (E + 8, FF)
    return we, wf


@jax.jit
def transformer_block(value, key_t, query, we, wf):
    """Forward pass: activations + pre-packed weight slabs -> pallas_call only."""
    N, L, E = query.shape

    # b_tile: whole batch in one grid step while B*L <= ~256 matmul rows (one step
    # amortizes the fixed pipeline overhead); for larger N use the biggest divisor of N
    # with b_tile*L <= 256 so the MXU fills and the "parallel" axis feeds both v7x TCs
    # without folding an unaligned batch into one VMEM-heavy block.
    cap = max(1, 256 // L)
    if N <= cap:
        b_tile = N
    else:
        b_tile = cap
        while N % b_tile:
            b_tile -= 1
    grid = (N // b_tile,)

    act_spec = pl.BlockSpec((b_tile, L, E), lambda n: (n, 0, 0))
    return pl.pallas_call(
        transformer_block_kernel,
        out_shape=jax.ShapeDtypeStruct((N, L, E), query.dtype),
        grid=grid,
        in_specs=[
            act_spec,                                       # value
            act_spec,                                       # key
            act_spec,                                       # query (also residual)
            pl.BlockSpec(we.shape, lambda n: (0, 0)),       # matrix slab
            pl.BlockSpec(wf.shape, lambda n: (0, 0)),       # W1^T + bias/gain slab
        ],
        out_specs=pl.BlockSpec((b_tile, L, E), lambda n: (n, 0, 0)),
        compiler_params=pltpu.CompilerParams(dimension_semantics=("parallel",)),
    )(value, key_t, query, we, wf)


def reference(value, key_t, query, p):
    """Pure-JAX mirror of the PyTorch forward (eval mode, mask=None)."""
    N, L, E = query.shape
    H, D = HEADS, HEAD_DIM
    v = value.reshape(N, L, H, D) @ p["wv"].T
    k = key_t.reshape(N, L, H, D) @ p["wk"].T
    q = query.reshape(N, L, H, D) @ p["wq"].T
    energy = jnp.einsum("nqhd,nkhd->nhqk", q, k)
    att = jax.nn.softmax(energy / (E ** 0.5), axis=3)
    out = jnp.einsum("nhql,nlhd->nqhd", att, v).reshape(N, L, E)
    out = out @ p["wo"].T + p["bo"]

    def ln(x, g, b):
        mu = x.mean(-1, keepdims=True)
        var = ((x - mu) ** 2).mean(-1, keepdims=True)
        return (x - mu) / jnp.sqrt(var + EPS) * g + b

    x = ln(out + query, p["g1"], p["be1"])
    f = jnp.maximum(x @ p["w1"].T + p["b1"], 0.0) @ p["w2"].T + p["b2"]
    return ln(f + x, p["g2"], p["be2"])


if __name__ == "__main__":
    root = jax.random.PRNGKey(0)
    k_v, k_k, k_q, k_p = jax.random.split(root, 4)

    N = 2
    value = jax.random.normal(k_v, (N, SEQ, EMBED), jnp.float32)
    key_t = jax.random.normal(k_k, (N, SEQ, EMBED), jnp.float32)
    query = jax.random.normal(k_q, (N, SEQ, EMBED), jnp.float32)

    params = init_params(k_p)
    we, wf = pack_params(params)        # one-time packing, outside the forward path

    out = transformer_block(value, key_t, query, we, wf)
    out = jax.block_until_ready(out)

    ref = reference(value, key_t, query, params)
    assert out.shape == (N, SEQ, EMBED)
    # tolerance relaxed slightly vs f32 exact because the softmax denominator uses the
    # EUP approximate reciprocal (pl.reciprocal(approx=True)).
    assert jnp.allclose(out, ref, atol=2e-3, rtol=2e-3), "Pallas output mismatch vs reference"

    print("KERNEL_OK")
</pallas_src>

<mosaic_0001>
module attributes {stable_mosaic.version = 11 : i64} {
  func.func @transformer_block_kernel(%arg0: i32, %arg1: memref<2x8x32xf32, #tpu.memory_space<vmem>>, %arg2: memref<2x8x32xf32, #tpu.memory_space<vmem>>, %arg3: memref<2x8x32xf32, #tpu.memory_space<vmem>>, %arg4: memref<256x32xf32, #tpu.memory_space<vmem>>, %arg5: memref<40x128xf32, #tpu.memory_space<vmem>>, %arg6: memref<2x8x32xf32, #tpu.memory_space<vmem>>) attributes {dimension_semantics = [#tpu.dimension_semantics<parallel>], iteration_bounds = array<i64: 1>, scalar_prefetch = 0 : i64, scratch_operands = 0 : i64, tpu.core_type = #tpu.core_type<tc>, window_params = [{transform_indices = @transform_0, window_bounds = array<i64: 2, 8, 32>}, {transform_indices = @transform_1, window_bounds = array<i64: 2, 8, 32>}, {transform_indices = @transform_2, window_bounds = array<i64: 2, 8, 32>}, {pipeline_mode = #tpu.pipeline_mode<synchronous>, transform_indices = @transform_3, window_bounds = array<i64: 256, 32>}, {pipeline_mode = #tpu.pipeline_mode<synchronous>, transform_indices = @transform_4, window_bounds = array<i64: 40, 128>}, {transform_indices = @transform_5, window_bounds = array<i64: 2, 8, 32>}]} {
    %c0 = arith.constant 0 : index
    %c0_0 = arith.constant 0 : index
    %0 = vector.load %arg4[%c0, %c0_0] : memref<256x32xf32, #tpu.memory_space<vmem>>, vector<32x32xf32>
    %c32 = arith.constant 32 : index
    %c0_1 = arith.constant 0 : index
    %1 = vector.load %arg4[%c32, %c0_1] : memref<256x32xf32, #tpu.memory_space<vmem>>, vector<32x32xf32>
    %c64 = arith.constant 64 : index
    %c0_2 = arith.constant 0 : index
    %2 = vector.load %arg4[%c64, %c0_2] : memref<256x32xf32, #tpu.memory_space<vmem>>, vector<32x32xf32>
    %c96 = arith.constant 96 : index
    %c0_3 = arith.constant 0 : index
    %3 = vector.load %arg4[%c96, %c0_3] : memref<256x32xf32, #tpu.memory_space<vmem>>, vector<32x32xf32>
    %c128 = arith.constant 128 : index
    %c0_4 = arith.constant 0 : index
    %4 = vector.load %arg4[%c128, %c0_4] : memref<256x32xf32, #tpu.memory_space<vmem>>, vector<128x32xf32>
    %c0_5 = arith.constant 0 : index
    %c0_6 = arith.constant 0 : index
    %5 = vector.load %arg5[%c0_5, %c0_6] : memref<40x128xf32, #tpu.memory_space<vmem>>, vector<32x128xf32>
    %c32_7 = arith.constant 32 : index
    %c0_8 = arith.constant 0 : index
    %6 = vector.load %arg5[%c32_7, %c0_8] : memref<40x128xf32, #tpu.memory_space<vmem>>, vector<8x128xf32>
    %c0_9 = arith.constant 0 : index
    %c0_10 = arith.constant 0 : index
    %c0_11 = arith.constant 0 : index
    %7 = vector.load %arg3[%c0_9, %c0_10, %c0_11] : memref<2x8x32xf32, #tpu.memory_space<vmem>>, vector<2x8x32xf32>
    %8 = vector.shape_cast %7 : vector<2x8x32xf32> to vector<16x32xf32>
    %c0_12 = arith.constant 0 : index
    %c0_13 = arith.constant 0 : index
    %c0_14 = arith.constant 0 : index
    %9 = vector.load %arg2[%c0_12, %c0_13, %c0_14] : memref<2x8x32xf32, #tpu.memory_space<vmem>>, vector<2x8x32xf32>
    %10 = vector.shape_cast %9 : vector<2x8x32xf32> to vector<16x32xf32>
    %c0_15 = arith.constant 0 : index
    %c0_16 = arith.constant 0 : index
    %c0_17 = arith.constant 0 : index
    %11 = vector.load %arg1[%c0_15, %c0_16, %c0_17] : memref<2x8x32xf32, #tpu.memory_space<vmem>>, vector<2x8x32xf32>
    %12 = vector.shape_cast %11 : vector<2x8x32xf32> to vector<16x32xf32>
    %cst = arith.constant dense<0.000000e+00> : vector<16x32xf32>
    %13 = tpu.matmul %8, %0, %cst {dimension_numbers = #tpu.dot_dimension_numbers<[1], [0], [0], [1], [0, 0, 1, 1], [], []>} : vector<16x32xf32>, vector<32x32xf32>, vector<16x32xf32> -> vector<16x32xf32>
    %14 = vector.shape_cast %13 : vector<16x32xf32> to vector<2x8x32xf32>
    %cst_18 = arith.constant dense<0.000000e+00> : vector<16x32xf32>
    %15 = tpu.matmul %10, %1, %cst_18 {dimension_numbers = #tpu.dot_dimension_numbers<[1], [0], [0], [1], [0, 0, 1, 1], [], []>} : vector<16x32xf32>, vector<32x32xf32>, vector<16x32xf32> -> vector<16x32xf32>
    %16 = vector.shape_cast %15 : vector<16x32xf32> to vector<2x8x32xf32>
    %cst_19 = arith.constant dense<0.000000e+00> : vector<16x32xf32>
    %17 = tpu.matmul %12, %2, %cst_19 {dimension_numbers = #tpu.dot_dimension_numbers<[1], [0], [0], [1], [0, 0, 1, 1], [], []>} : vector<16x32xf32>, vector<32x32xf32>, vector<16x32xf32> -> vector<16x32xf32>
    %18 = vector.shape_cast %17 : vector<16x32xf32> to vector<2x8x32xf32>
    %19 = vector.extract_strided_slice %14 {offsets = [0, 0, 0], sizes = [2, 8, 8], strides = [1, 1, 1]} : vector<2x8x32xf32> to vector<2x8x8xf32>
    %20 = vector.extract_strided_slice %16 {offsets = [0, 0, 0], sizes = [2, 8, 8], strides = [1, 1, 1]} : vector<2x8x32xf32> to vector<2x8x8xf32>
    "tpu.trace_start"() <{level = 10 : i32, message = "bqd,bkd->bqk"}> : () -> ()
    %cst_20 = arith.constant dense<0.000000e+00> : vector<2x8x8xf32>
    %21 = tpu.matmul %19, %20, %cst_20 {dimension_numbers = #tpu.dot_dimension_numbers<[2], [2], [1], [1], [0, 0, 0, 1, 1, 1], [0], [0]>} : vector<2x8x8xf32>, vector<2x8x8xf32>, vector<2x8x8xf32> -> vector<2x8x8xf32>
    "tpu.trace_stop"() : () -> ()
    %cst_21 = arith.constant dense<0xFF800000> : vector<2x8xf32>
    %22 = vector.multi_reduction <maximumf>, %21, %cst_21 [2] : vector<2x8x8xf32> to vector<2x8xf32>
    %23 = vector.shape_cast %22 : vector<2x8xf32> to vector<2x8x1xf32>
    %24 = vector.broadcast %23 : vector<2x8x1xf32> to vector<2x8x8xf32>
    %25 = arith.subf %21, %24 : vector<2x8x8xf32>
    %26 = math.exp %25 : vector<2x8x8xf32>
    %cst_22 = arith.constant dense<0.000000e+00> : vector<2x8xf32>
    %27 = vector.multi_reduction <add>, %26, %cst_22 [2] : vector<2x8x8xf32> to vector<2x8xf32>
    %28 = vector.shape_cast %27 : vector<2x8xf32> to vector<2x8x1xf32>
    %29 = tpu.reciprocal %28 {approx = true} : vector<2x8x1xf32> -> vector<2x8x1xf32>
    %30 = vector.broadcast %29 : vector<2x8x1xf32> to vector<2x8x8xf32>
    %31 = arith.mulf %26, %30 : vector<2x8x8xf32>
    %32 = vector.extract_strided_slice %18 {offsets = [0, 0, 0], sizes = [2, 8, 8], strides = [1, 1, 1]} : vector<2x8x32xf32> to vector<2x8x8xf32>
    "tpu.trace_start"() <{level = 10 : i32, message = "bqk,bkd->bqd"}> : () -> ()
    %cst_23 = arith.constant dense<0.000000e+00> : vector<2x8x8xf32>
    %33 = tpu.matmul %31, %32, %cst_23 {dimension_numbers = #tpu.dot_dimension_numbers<[2], [1], [1], [2], [0, 0, 0, 1, 1, 2], [0], [0]>} : vector<2x8x8xf32>, vector<2x8x8xf32>, vector<2x8x8xf32> -> vector<2x8x8xf32>
    "tpu.trace_stop"() : () -> ()
    %34 = vector.extract_strided_slice %14 {offsets = [0, 0, 8], sizes = [2, 8, 8], strides = [1, 1, 1]} : vector<2x8x32xf32> to vector<2x8x8xf32>
    %35 = vector.extract_strided_slice %16 {offsets = [0, 0, 8], sizes = [2, 8, 8], strides = [1, 1, 1]} : vector<2x8x32xf32> to vector<2x8x8xf32>
    "tpu.trace_start"() <{level = 10 : i32, message = "bqd,bkd->bqk"}> : () -> ()
    %cst_24 = arith.constant dense<0.000000e+00> : vector<2x8x8xf32>
    %36 = tpu.matmul %34, %35, %cst_24 {dimension_numbers = #tpu.dot_dimension_numbers<[2], [2], [1], [1], [0, 0, 0, 1, 1, 1], [0], [0]>} : vector<2x8x8xf32>, vector<2x8x8xf32>, vector<2x8x8xf32> -> vector<2x8x8xf32>
    "tpu.trace_stop"() : () -> ()
    %cst_25 = arith.constant dense<0xFF800000> : vector<2x8xf32>
    %37 = vector.multi_reduction <maximumf>, %36, %cst_25 [2] : vector<2x8x8xf32> to vector<2x8xf32>
    %38 = vector.shape_cast %37 : vector<2x8xf32> to vector<2x8x1xf32>
    %39 = vector.broadcast %38 : vector<2x8x1xf32> to vector<2x8x8xf32>
    %40 = arith.subf %36, %39 : vector<2x8x8xf32>
    %41 = math.exp %40 : vector<2x8x8xf32>
    %cst_26 = arith.constant dense<0.000000e+00> : vector<2x8xf32>
    %42 = vector.multi_reduction <add>, %41, %cst_26 [2] : vector<2x8x8xf32> to vector<2x8xf32>
    %43 = vector.shape_cast %42 : vector<2x8xf32> to vector<2x8x1xf32>
    %44 = tpu.reciprocal %43 {approx = true} : vector<2x8x1xf32> -> vector<2x8x1xf32>
    %45 = vector.broadcast %44 : vector<2x8x1xf32> to vector<2x8x8xf32>
    %46 = arith.mulf %41, %45 : vector<2x8x8xf32>
    %47 = vector.extract_strided_slice %18 {offsets = [0, 0, 8], sizes = [2, 8, 8], strides = [1, 1, 1]} : vector<2x8x32xf32> to vector<2x8x8xf32>
    "tpu.trace_start"() <{level = 10 : i32, message = "bqk,bkd->bqd"}> : () -> ()
    %cst_27 = arith.constant dense<0.000000e+00> : vector<2x8x8xf32>
    %48 = tpu.matmul %46, %47, %cst_27 {dimension_numbers = #tpu.dot_dimension_numbers<[2], [1], [1], [2], [0, 0, 0, 1, 1, 2], [0], [0]>} : vector<2x8x8xf32>, vector<2x8x8xf32>, vector<2x8x8xf32> -> vector<2x8x8xf32>
    "tpu.trace_stop"() : () -> ()
    %49 = vector.extract_strided_slice %14 {offsets = [0, 0, 16], sizes = [2, 8, 8], strides = [1, 1, 1]} : vector<2x8x32xf32> to vector<2x8x8xf32>
    %50 = vector.extract_strided_slice %16 {offsets = [0, 0, 16], sizes = [2, 8, 8], strides = [1, 1, 1]} : vector<2x8x32xf32> to vector<2x8x8xf32>
    "tpu.trace_start"() <{level = 10 : i32, message = "bqd,bkd->bqk"}> : () -> ()
    %cst_28 = arith.constant dense<0.000000e+00> : vector<2x8x8xf32>
    %51 = tpu.matmul %49, %50, %cst_28 {dimension_numbers = #tpu.dot_dimension_numbers<[2], [2], [1], [1], [0, 0, 0, 1, 1, 1], [0], [0]>} : vector<2x8x8xf32>, vector<2x8x8xf32>, vector<2x8x8xf32> -> vector<2x8x8xf32>
    "tpu.trace_stop"() : () -> ()
    %cst_29 = arith.constant dense<0xFF800000> : vector<2x8xf32>
    %52 = vector.multi_reduction <maximumf>, %51, %cst_29 [2] : vector<2x8x8xf32> to vector<2x8xf32>
    %53 = vector.shape_cast %52 : vector<2x8xf32> to vector<2x8x1xf32>
    %54 = vector.broadcast %53 : vector<2x8x1xf32> to vector<2x8x8xf32>
    %55 = arith.subf %51, %54 : vector<2x8x8xf32>
    %56 = math.exp %55 : vector<2x8x8xf32>
    %cst_30 = arith.constant dense<0.000000e+00> : vector<2x8xf32>
    %57 = vector.multi_reduction <add>, %56, %cst_30 [2] : vector<2x8x8xf32> to vector<2x8xf32>
    %58 = vector.shape_cast %57 : vector<2x8xf32> to vector<2x8x1xf32>
    %59 = tpu.reciprocal %58 {approx = true} : vector<2x8x1xf32> -> vector<2x8x1xf32>
    %60 = vector.broadcast %59 : vector<2x8x1xf32> to vector<2x8x8xf32>
    %61 = arith.mulf %56, %60 : vector<2x8x8xf32>
    %62 = vector.extract_strided_slice %18 {offsets = [0, 0, 16], sizes = [2, 8, 8], strides = [1, 1, 1]} : vector<2x8x32xf32> to vector<2x8x8xf32>
    "tpu.trace_start"() <{level = 10 : i32, message = "bqk,bkd->bqd"}> : () -> ()
    %cst_31 = arith.constant dense<0.000000e+00> : vector<2x8x8xf32>
    %63 = tpu.matmul %61, %62, %cst_31 {dimension_numbers = #tpu.dot_dimension_numbers<[2], [1], [1], [2], [0, 0, 0, 1, 1, 2], [0], [0]>} : vector<2x8x8xf32>, vector<2x8x8xf32>, vector<2x8x8xf32> -> vector<2x8x8xf32>
    "tpu.trace_stop"() : () -> ()
    %64 = vector.extract_strided_slice %14 {offsets = [0, 0, 24], sizes = [2, 8, 8], strides = [1, 1, 1]} : vector<2x8x32xf32> to vector<2x8x8xf32>
    %65 = vector.extract_strided_slice %16 {offsets = [0, 0, 24], sizes = [2, 8, 8], strides = [1, 1, 1]} : vector<2x8x32xf32> to vector<2x8x8xf32>
    "tpu.trace_start"() <{level = 10 : i32, message = "bqd,bkd->bqk"}> : () -> ()
    %cst_32 = arith.constant dense<0.000000e+00> : vector<2x8x8xf32>
    %66 = tpu.matmul %64, %65, %cst_32 {dimension_numbers = #tpu.dot_dimension_numbers<[2], [2], [1], [1], [0, 0, 0, 1, 1, 1], [0], [0]>} : vector<2x8x8xf32>, vector<2x8x8xf32>, vector<2x8x8xf32> -> vector<2x8x8xf32>
    "tpu.trace_stop"() : () -> ()
    %cst_33 = arith.constant dense<0xFF800000> : vector<2x8xf32>
    %67 = vector.multi_reduction <maximumf>, %66, %cst_33 [2] : vector<2x8x8xf32> to vector<2x8xf32>
    %68 = vector.shape_cast %67 : vector<2x8xf32> to vector<2x8x1xf32>
    %69 = vector.broadcast %68 : vector<2x8x1xf32> to vector<2x8x8xf32>
    %70 = arith.subf %66, %69 : vector<2x8x8xf32>
    %71 = math.exp %70 : vector<2x8x8xf32>
    %cst_34 = arith.constant dense<0.000000e+00> : vector<2x8xf32>
    %72 = vector.multi_reduction <add>, %71, %cst_34 [2] : vector<2x8x8xf32> to vector<2x8xf32>
    %73 = vector.shape_cast %72 : vector<2x8xf32> to vector<2x8x1xf32>
    %74 = tpu.reciprocal %73 {approx = true} : vector<2x8x1xf32> -> vector<2x8x1xf32>
    %75 = vector.broadcast %74 : vector<2x8x1xf32> to vector<2x8x8xf32>
    %76 = arith.mulf %71, %75 : vector<2x8x8xf32>
    %77 = vector.extract_strided_slice %18 {offsets = [0, 0, 24], sizes = [2, 8, 8], strides = [1, 1, 1]} : vector<2x8x32xf32> to vector<2x8x8xf32>
    "tpu.trace_start"() <{level = 10 : i32, message = "bqk,bkd->bqd"}> : () -> ()
    %cst_35 = arith.constant dense<0.000000e+00> : vector<2x8x8xf32>
    %78 = tpu.matmul %76, %77, %cst_35 {dimension_numbers = #tpu.dot_dimension_numbers<[2], [1], [1], [2], [0, 0, 0, 1, 1, 2], [0], [0]>} : vector<2x8x8xf32>, vector<2x8x8xf32>, vector<2x8x8xf32> -> vector<2x8x8xf32>
    "tpu.trace_stop"() : () -> ()
    %79 = tpu.concatenate %33, %48, %63, %78 in 2 : vector<2x8x8xf32>, vector<2x8x8xf32>, vector<2x8x8xf32>, vector<2x8x8xf32> -> vector<2x8x32xf32>
    %80 = vector.shape_cast %79 : vector<2x8x32xf32> to vector<16x32xf32>
    %81 = vector.extract_strided_slice %6 {offsets = [1, 0], sizes = [1, 32], strides = [1, 1]} : vector<8x128xf32> to vector<1x32xf32>
    %cst_36 = arith.constant dense<0.000000e+00> : vector<16x32xf32>
    %82 = tpu.matmul %80, %3, %cst_36 {dimension_numbers = #tpu.dot_dimension_numbers<[1], [0], [0], [1], [0, 0, 1, 1], [], []>} : vector<16x32xf32>, vector<32x32xf32>, vector<16x32xf32> -> vector<16x32xf32>
    %83 = vector.broadcast %81 : vector<1x32xf32> to vector<16x32xf32>
    %84 = arith.addf %82, %83 : vector<16x32xf32>
    %85 = vector.extract_strided_slice %6 {offsets = [2, 0], sizes = [1, 32], strides = [1, 1]} : vector<8x128xf32> to vector<1x32xf32>
    %86 = vector.extract_strided_slice %6 {offsets = [3, 0], sizes = [1, 32], strides = [1, 1]} : vector<8x128xf32> to vector<1x32xf32>
    %87 = arith.addf %84, %8 : vector<16x32xf32>
    %cst_37 = arith.constant dense<0.000000e+00> : vector<16xf32>
    %88 = vector.multi_reduction <add>, %87, %cst_37 [1] : vector<16x32xf32> to vector<16xf32>
    %89 = vector.shape_cast %88 : vector<16xf32> to vector<16x1xf32>
    %cst_38 = arith.constant 3.200000e+01 : f32
    %90 = vector.broadcast %cst_38 : f32 to vector<16x1xf32>
    %91 = arith.divf %89, %90 : vector<16x1xf32>
    %92 = vector.broadcast %91 : vector<16x1xf32> to vector<16x32xf32>
    %93 = arith.subf %87, %92 : vector<16x32xf32>
    %94 = arith.mulf %93, %93 : vector<16x32xf32>
    %cst_39 = arith.constant dense<0.000000e+00> : vector<16xf32>
    %95 = vector.multi_reduction <add>, %94, %cst_39 [1] : vector<16x32xf32> to vector<16xf32>
    %96 = vector.shape_cast %95 : vector<16xf32> to vector<16x1xf32>
    %cst_40 = arith.constant 3.200000e+01 : f32
    %97 = vector.broadcast %cst_40 : f32 to vector<16x1xf32>
    %98 = arith.divf %96, %97 : vector<16x1xf32>
    %cst_41 = arith.constant 9.99999974E-6 : f32
    %99 = vector.broadcast %cst_41 : f32 to vector<16x1xf32>
    %100 = arith.addf %98, %99 : vector<16x1xf32>
    %101 = math.rsqrt %100 : vector<16x1xf32>
    %102 = vector.broadcast %101 : vector<16x1xf32> to vector<16x32xf32>
    %103 = arith.mulf %93, %102 : vector<16x32xf32>
    %104 = vector.broadcast %85 : vector<1x32xf32> to vector<16x32xf32>
    %105 = arith.mulf %103, %104 : vector<16x32xf32>
    %106 = vector.broadcast %86 : vector<1x32xf32> to vector<16x32xf32>
    %107 = arith.addf %105, %106 : vector<16x32xf32>
    %108 = vector.extract_strided_slice %6 {offsets = [0, 0], sizes = [1, 128], strides = [1, 1]} : vector<8x128xf32> to vector<1x128xf32>
    %109 = vector.extract_strided_slice %6 {offsets = [6, 0], sizes = [1, 32], strides = [1, 1]} : vector<8x128xf32> to vector<1x32xf32>
    %cst_42 = arith.constant dense<0.000000e+00> : vector<16x128xf32>
    %110 = tpu.matmul %107, %5, %cst_42 {dimension_numbers = #tpu.dot_dimension_numbers<[1], [0], [0], [1], [0, 0, 1, 1], [], []>} : vector<16x32xf32>, vector<32x128xf32>, vector<16x128xf32> -> vector<16x128xf32>
    %111 = vector.broadcast %108 : vector<1x128xf32> to vector<16x128xf32>
    %112 = arith.addf %110, %111 : vector<16x128xf32>
    %cst_43 = arith.constant 0.000000e+00 : f32
    %113 = vector.broadcast %cst_43 : f32 to vector<16x128xf32>
    %114 = arith.maximumf %112, %113 : vector<16x128xf32>
    %cst_44 = arith.constant dense<0.000000e+00> : vector<16x32xf32>
    %115 = tpu.matmul %114, %4, %cst_44 {dimension_numbers = #tpu.dot_dimension_numbers<[1], [0], [0], [1], [0, 0, 1, 1], [], []>} : vector<16x128xf32>, vector<128x32xf32>, vector<16x32xf32> -> vector<16x32xf32>
    %116 = vector.broadcast %109 : vector<1x32xf32> to vector<16x32xf32>
    %117 = arith.addf %115, %116 : vector<16x32xf32>
    %118 = vector.extract_strided_slice %6 {offsets = [4, 0], sizes = [1, 32], strides = [1, 1]} : vector<8x128xf32> to vector<1x32xf32>
    %119 = vector.extract_strided_slice %6 {offsets = [5, 0], sizes = [1, 32], strides = [1, 1]} : vector<8x128xf32> to vector<1x32xf32>
    %120 = arith.addf %117, %107 : vector<16x32xf32>
    %cst_45 = arith.constant dense<0.000000e+00> : vector<16xf32>
    %121 = vector.multi_reduction <add>, %120, %cst_45 [1] : vector<16x32xf32> to vector<16xf32>
    %122 = vector.shape_cast %121 : vector<16xf32> to vector<16x1xf32>
    %cst_46 = arith.constant 3.200000e+01 : f32
    %123 = vector.broadcast %cst_46 : f32 to vector<16x1xf32>
    %124 = arith.divf %122, %123 : vector<16x1xf32>
    %125 = vector.broadcast %124 : vector<16x1xf32> to vector<16x32xf32>
    %126 = arith.subf %120, %125 : vector<16x32xf32>
    %127 = arith.mulf %126, %126 : vector<16x32xf32>
    %cst_47 = arith.constant dense<0.000000e+00> : vector<16xf32>
    %128 = vector.multi_reduction <add>, %127, %cst_47 [1] : vector<16x32xf32> to vector<16xf32>
    %129 = vector.shape_cast %128 : vector<16xf32> to vector<16x1xf32>
    %cst_48 = arith.constant 3.200000e+01 : f32
    %130 = vector.broadcast %cst_48 : f32 to vector<16x1xf32>
    %131 = arith.divf %129, %130 : vector<16x1xf32>
    %cst_49 = arith.constant 9.99999974E-6 : f32
    %132 = vector.broadcast %cst_49 : f32 to vector<16x1xf32>
    %133 = arith.addf %131, %132 : vector<16x1xf32>
    %134 = math.rsqrt %133 : vector<16x1xf32>
    %135 = vector.broadcast %134 : vector<16x1xf32> to vector<16x32xf32>
    %136 = arith.mulf %126, %135 : vector<16x32xf32>
    %137 = vector.broadcast %118 : vector<1x32xf32> to vector<16x32xf32>
    %138 = arith.mulf %136, %137 : vector<16x32xf32>
    %139 = vector.broadcast %119 : vector<1x32xf32> to vector<16x32xf32>
    %140 = arith.addf %138, %139 : vector<16x32xf32>
    %141 = vector.shape_cast %140 : vector<16x32xf32> to vector<2x8x32xf32>
    %c0_50 = arith.constant 0 : index
    %c0_51 = arith.constant 0 : index
    %c0_52 = arith.constant 0 : index
    %142 = vector.load %arg6[%c0_50, %c0_51, %c0_52] : memref<2x8x32xf32, #tpu.memory_space<vmem>>, vector<2x8x32xf32>
    tpu.vector_store %arg6[%c0_50, %c0_51, %c0_52], %141 {strides = array<i32>} : memref<2x8x32xf32, #tpu.memory_space<vmem>>, vector<2x8x32xf32>,
    return
  }
  func.func @transform_0(%arg0: i32) -> (i32, i32, i32) {
    %c0_i32 = arith.constant 0 : i32
    %c0_i32_0 = arith.constant 0 : i32
    %c0_i32_1 = arith.constant 0 : i32
    return %arg0, %c0_i32, %c0_i32_0 : i32, i32, i32
  }
  func.func @transform_1(%arg0: i32) -> (i32, i32, i32) {
    %c0_i32 = arith.constant 0 : i32
    %c0_i32_0 = arith.constant 0 : i32
    %c0_i32_1 = arith.constant 0 : i32
    return %arg0, %c0_i32, %c0_i32_0 : i32, i32, i32
  }
  func.func @transform_2(%arg0: i32) -> (i32, i32, i32) {
    %c0_i32 = arith.constant 0 : i32
    %c0_i32_0 = arith.constant 0 : i32
    %c0_i32_1 = arith.constant 0 : i32
    return %arg0, %c0_i32, %c0_i32_0 : i32, i32, i32
  }
  func.func @transform_3(%arg0: i32) -> (i32, i32) {
    %c0_i32 = arith.constant 0 : i32
    %c0_i32_0 = arith.constant 0 : i32
    %c0_i32_1 = arith.constant 0 : i32
    return %c0_i32, %c0_i32_0 : i32, i32
  }
  func.func @transform_4(%arg0: i32) -> (i32, i32) {
    %c0_i32 = arith.constant 0 : i32
    %c0_i32_0 = arith.constant 0 : i32
    %c0_i32_1 = arith.constant 0 : i32
    return %c0_i32, %c0_i32_0 : i32, i32
  }
  func.func @transform_5(%arg0: i32) -> (i32, i32, i32) {
    %c0_i32 = arith.constant 0 : i32
    %c0_i32_0 = arith.constant 0 : i32
    %c0_i32_1 = arith.constant 0 : i32
    return %arg0, %c0_i32, %c0_i32_0 : i32, i32, i32
  }
}

</mosaic_0001>

<llo_original>
// kernel: transformer_block.1
$region0: #{transformer_block.1}
  #allocation0 [shape = 'u32[]', space=smem, size = 0x4, offset = 0x4, fixed_abs, tag = 'smem constant byte address 0x4 - core index']
  #allocation1 [shape = 'u32[144,128]{1,0:T(1,128)}', space=vmem, size = 0x12000, scoped, tag = 'internal scratch']
  %s0 = inlined_call_operand.vmem [shape: f32[2,8,32], index: 0, kind: input, shape index: {}]
  %s1 = inlined_call_operand.vmem [shape: f32[2,8,32], index: 1, kind: input, shape index: {}]
  %s2 = inlined_call_operand.vmem [shape: f32[2,8,32], index: 2, kind: input, shape index: {}]
  %s3 = inlined_call_operand.vmem [shape: f32[256,32], index: 3, kind: input, shape index: {}]
  %s4 = inlined_call_operand.vmem [shape: f32[40,128], index: 4, kind: input, shape index: {}]
  %s5 = inlined_call_operand.hbm [shape: f32[2,8,32], index: 5, kind: output, shape index: {}]
  %s6 = sld [smem:[#allocation0]]
  $region30: #{transformer_block.1} parent=0
    _
  %s8 = ssub.s32 1, %s6
  %s9 = scalar_select 0, %s8, %s6
  $region1: #{transformer_block.1} parent=0
    #allocation2 [shape = 'u8[8192]{0}', space=vmem, size = 0x2000, scoped, tag = 'output window, operand 0, single buffered']
    #allocation3 [shape = 's32[1]{0}', space=sflag, size = 0x4, scoped, tag = 'scoped memory for transformer_block.1']
    %10 = vsyncpa [#allocation3], 0
    // Predicated region
    $region2: #{transformer_block.1} parent=1 // pred_check
      _
    $region3: #{transformer_block.1} parent=1 // pred_check_branch
      %12 = sbr.rel (0) target = $region5
    $region4: #{transformer_block.1} parent=1 // pred_region
      _
    $region5: #{transformer_block.1} parent=1 // pred_fallthru
      _
    // Predicated region
    $region6: #{transformer_block.1} parent=1 // pred_check
      _
    $region7: #{transformer_block.1} parent=1 // pred_check_branch
      %14 = sbr.rel (0) target = $region9
    $region8: #{transformer_block.1} parent=1 // pred_region
      _
    $region9: #{transformer_block.1} parent=1 // pred_fallthru
      _
    // Predicated region
    $region10: #{transformer_block.1} parent=1 // pred_check
      _
    $region11: #{transformer_block.1} parent=1 // pred_check_branch
      %16 = sbr.rel (0) target = $region13
    $region12: #{transformer_block.1} parent=1 // pred_region
      _
    $region13: #{transformer_block.1} parent=1 // pred_fallthru
      _
    // Predicated region
    $region14: #{transformer_block.1} parent=1 // pred_check
      _
    $region15: #{transformer_block.1} parent=1 // pred_check_branch
      %18 = sbr.rel (0) target = $region17
    $region16: #{transformer_block.1} parent=1 // pred_region
      _
    $region17: #{transformer_block.1} parent=1 // pred_fallthru
      _
    // Predicated region
    $region18: #{transformer_block.1} parent=1 // pred_check
      _
    $region19: #{transformer_block.1} parent=1 // pred_check_branch
      %20 = sbr.rel (0) target = $region21
    $region20: #{transformer_block.1} parent=1 // pred_region
      _
    $region21: #{transformer_block.1} parent=1 // pred_fallthru
      _
    %v21 = vld [vmem:[%s3] sm:$0xff]
    %v22 = vld [vmem:[%s3 + $0x8] sm:$0xff]
    %v23 = vld [vmem:[%s3 + $0x10] sm:$0xff]
    %v24 = vld [vmem:[%s3 + $0x18] sm:$0xff]
    %v25 = vld [vmem:[%s3 + $0x20] sm:$0xff]
    %v26 = vld [vmem:[%s3 + $0x28] sm:$0xff]
    %v27 = vld [vmem:[%s3 + $0x30] sm:$0xff]
    %v28 = vld [vmem:[%s3 + $0x38] sm:$0xff]
    %v29 = vld [vmem:[%s3 + $0x40] sm:$0xff]
    %v30 = vld [vmem:[%s3 + $0x48] sm:$0xff]
    %v31 = vld [vmem:[%s3 + $0x50] sm:$0xff]
    %v32 = vld [vmem:[%s3 + $0x58] sm:$0xff]
    %v33 = vld [vmem:[%s3 + $0x60] sm:$0xff]
    %v34 = vld [vmem:[%s3 + $0x68] sm:$0xff]
    %v35 = vld [vmem:[%s3 + $0x70] sm:$0xff]
    %v36 = vld [vmem:[%s3 + $0x78] sm:$0xff]
    %v37 = vld [vmem:[%s3 + $0x80] sm:$0xff]
    %v38 = vld [vmem:[%s3 + $0x88] sm:$0xff]
    %v39 = vld [vmem:[%s3 + $0x90] sm:$0xff]
    %v40 = vld [vmem:[%s3 + $0x98] sm:$0xff]
    %v41 = vld [vmem:[%s3 + $0xa0] sm:$0xff]
    %v42 = vld [vmem:[%s3 + $0xa8] sm:$0xff]
    %v43 = vld [vmem:[%s3 + $0xb0] sm:$0xff]
    %v44 = vld [vmem:[%s3 + $0xb8] sm:$0xff]
    %v45 = vld [vmem:[%s3 + $0xc0] sm:$0xff]
    %v46 = vld [vmem:[%s3 + $0xc8] sm:$0xff]
    %v47 = vld [vmem:[%s3 + $0xd0] sm:$0xff]
    %v48 = vld [vmem:[%s3 + $0xd8] sm:$0xff]
    %v49 = vld [vmem:[%s3 + $0xe0] sm:$0xff]
    %v50 = vld [vmem:[%s3 + $0xe8] sm:$0xff]
    %v51 = vld [vmem:[%s3 + $0xf0] sm:$0xff]
    %v52 = vld [vmem:[%s3 + $0xf8] sm:$0xff]
    %v53 = vld [vmem:[%s4] sm:$0xff]
    %v54 = vld [vmem:[%s4 + $0x8] sm:$0xff]
    %v55 = vld [vmem:[%s4 + $0x10] sm:$0xff]
    %v56 = vld [vmem:[%s4 + $0x18] sm:$0xff]
    %v57 = vld [vmem:[%s4 + $0x20] sm:$0xff]
    %v58 = vld [vmem:[%s2] sm:$0xff]
    %v59 = vld [vmem:[%s2 + $0x8] sm:$0xff]
    %v60 = vld [vmem:[%s1] sm:$0xff]
    %v61 = vld [vmem:[%s1 + $0x8] sm:$0xff]
    %v62 = vld [vmem:[%s0] sm:$0xff]
    %v63 = vld [vmem:[%s0 + $0x8] sm:$0xff]
    %vm64 = vcmask 261120
    %v66 = vsel %vm64, %v58, 0
    %v69 = vsel %vm64, %v59, 0
    %71 = vmatprep.subr.mxu0 0.0
    %72 = vmatpush1.msra.mxu0 0.0
    %73 = vmatprep.subr.mxu0 0.0
    %74 = vmatpush1.msra.mxu0 0.0
    %75 = vmatprep.subr.mxu0 0.0
    %76 = vmatpush1.msra.mxu0 0.0
    %77 = vmatprep.subr.mxu0 0.0
    %78 = vmatpush1.msra.mxu0 0.0
    %79 = vmatprep.subr.mxu0 0.0
    %80 = vmatpush1.msra.mxu0 0.0
    %81 = vmatprep.subr.mxu0 0.0
    %82 = vmatpush1.msra.mxu0 0.0
    %83 = vmatprep.subr.mxu0 0.0
    %84 = vmatpush1.msra.mxu0 0.0
    %85 = vmatprep.subr.mxu0 0.0
    %86 = vmatpush1.msra.mxu0 0.0
    %87 = vmatprep.subr.mxu0 0.0
    %88 = vmatpush1.msra.mxu0 0.0
    %89 = vmatprep.subr.mxu0 0.0
    %90 = vmatpush1.msra.mxu0 0.0
    %91 = vmatprep.subr.mxu0 0.0
    %92 = vmatpush1.msra.mxu0 0.0
    %93 = vmatprep.subr.mxu0 0.0
    %94 = vmatpush1.msra.mxu0 0.0
    %95 = vmatprep.subr.mxu0 0.0
    %96 = vmatpush1.msra.mxu0 %v24
    %97 = vmatprep.subr.mxu0 0.0
    %98 = vmatpush1.msra.mxu0 %v23
    %99 = vmatprep.subr.mxu0 0.0
    %100 = vmatpush1.msra.mxu0 %v22
    %101 = vmatprep.subr.mxu0 0.0
    %102 = vmatpush1.msra.mxu0 %v21
    %103 = vmatprep.subr.mxu0 0.0
    %104 = vmatpush2.msra.mxu0 0.0
    %105 = vmatprep.subr.mxu0 0.0
    %106 = vmatpush2.msra.mxu0 0.0
    %107 = vmatprep.subr.mxu0 0.0
    %108 = vmatpush2.msra.mxu0 0.0
    %109 = vmatprep.subr.mxu0 0.0
    %110 = vmatpush2.msra.mxu0 0.0
    %111 = vmatprep.subr.mxu0 0.0
    %112 = vmatpush2.msra.mxu0 0.0
    %113 = vmatprep.subr.mxu0 0.0
    %114 = vmatpush2.msra.mxu0 0.0
    %115 = vmatprep.subr.mxu0 0.0
    %116 = vmatpush2.msra.mxu0 0.0
    %117 = vmatprep.subr.mxu0 0.0
    %118 = vmatpush2.msra.mxu0 0.0
    %119 = vmatprep.subr.mxu0 0.0
    %120 = vmatpush2.msra.mxu0 0.0
    %121 = vmatprep.subr.mxu0 0.0
    %122 = vmatpush2.msra.mxu0 0.0
    %123 = vmatprep.subr.mxu0 0.0
    %124 = vmatpush2.msra.mxu0 0.0
    %125 = vmatprep.subr.mxu0 0.0
    %126 = vmatpush2.msra.mxu0 0.0
    %127 = vmatprep.subr.mxu0 0.0
    %128 = vmatpush2.msra.mxu0 0.0
    %129 = vmatprep.subr.mxu0 0.0
    %130 = vmatpush2.msra.mxu0 0.0
    %131 = vmatprep.subr.mxu0 0.0
    %132 = vmatpush2.msra.mxu0 0.0
    %133 = vmatprep.subr.mxu0 0.0
    %134 = vmatpush2.msra.mxu0 0.0
    %135 = vmatprep.mubr.f32.mxu0 0.0
    %136 = vmatmul.mubr.f32.gmra.mxu0 %v66
    %v137 = vpop.f32.mrf.mxu0
    %v138 = vadd.f32 0.0, %v137
    %v139 = vpop.f32.mrf.mxu0
    %140 = vmatprep.mubr.f32.mxu0 0.0
    %141 = vmatmul.mubr.f32.gmra.mxu0 %v69
    %v142 = vpop.f32.mrf.mxu0
    %v143 = vadd.f32 0.0, %v142
    %v144 = vpop.f32.mrf.mxu0
    %145 = vdwg.mxu0
    %v147 = vsel %vm64, %v60, 0
    %v150 = vsel %vm64, %v61, 0
    %152 = vmatprep.subr.mxu0 0.0
    %153 = vmatpush1.msra.mxu0 0.0
    %154 = vmatprep.subr.mxu0 0.0
    %155 = vmatpush1.msra.mxu0 0.0
    %156 = vmatprep.subr.mxu0 0.0
    %157 = vmatpush1.msra.mxu0 0.0
    %158 = vmatprep.subr.mxu0 0.0
    %159 = vmatpush1.msra.mxu0 0.0
    %160 = vmatprep.subr.mxu0 0.0
    %161 = vmatpush1.msra.mxu0 0.0
    %162 = vmatprep.subr.mxu0 0.0
    %163 = vmatpush1.msra.mxu0 0.0
    %164 = vmatprep.subr.mxu0 0.0
    %165 = vmatpush1.msra.mxu0 0.0
    %166 = vmatprep.subr.mxu0 0.0
    %167 = vmatpush1.msra.mxu0 0.0
    %168 = vmatprep.subr.mxu0 0.0
    %169 = vmatpush1.msra.mxu0 0.0
    %170 = vmatprep.subr.mxu0 0.0
    %171 = vmatpush1.msra.mxu0 0.0
    %172 = vmatprep.subr.mxu0 0.0
    %173 = vmatpush1.msra.mxu0 0.0
    %174 = vmatprep.subr.mxu0 0.0
    %175 = vmatpush1.msra.mxu0 0.0
    %176 = vmatprep.subr.mxu0 0.0
    %177 = vmatpush1.msra.mxu0 %v28
    %178 = vmatprep.subr.mxu0 0.0
    %179 = vmatpush1.msra.mxu0 %v27
    %180 = vmatprep.subr.mxu0 0.0
    %181 = vmatpush1.msra.mxu0 %v26
    %182 = vmatprep.subr.mxu0 0.0
    %183 = vmatpush1.msra.mxu0 %v25
    %184 = vmatprep.subr.mxu0 0.0
    %185 = vmatpush2.msra.mxu0 0.0
    %186 = vmatprep.subr.mxu0 0.0
    %187 = vmatpush2.msra.mxu0 0.0
    %188 = vmatprep.subr.mxu0 0.0
    %189 = vmatpush2.msra.mxu0 0.0
    %190 = vmatprep.subr.mxu0 0.0
    %191 = vmatpush2.msra.mxu0 0.0
    %192 = vmatprep.subr.mxu0 0.0
    %193 = vmatpush2.msra.mxu0 0.0
    %194 = vmatprep.subr.mxu0 0.0
    %195 = vmatpush2.msra.mxu0 0.0
    %196 = vmatprep.subr.mxu0 0.0
    %197 = vmatpush2.msra.mxu0 0.0
    %198 = vmatprep.subr.mxu0 0.0
    %199 = vmatpush2.msra.mxu0 0.0
    %200 = vmatprep.subr.mxu0 0.0
    %201 = vmatpush2.msra.mxu0 0.0
    %202 = vmatprep.subr.mxu0 0.0
    %203 = vmatpush2.msra.mxu0 0.0
    %204 = vmatprep.subr.mxu0 0.0
    %205 = vmatpush2.msra.mxu0 0.0
    %206 = vmatprep.subr.mxu0 0.0
    %207 = vmatpush2.msra.mxu0 0.0
    %208 = vmatprep.subr.mxu0 0.0
    %209 = vmatpush2.msra.mxu0 0.0
    %210 = vmatprep.subr.mxu0 0.0
    %211 = vmatpush2.msra.mxu0 0.0
    %212 = vmatprep.subr.mxu0 0.0
    %213 = vmatpush2.msra.mxu0 0.0
    %214 = vmatprep.subr.mxu0 0.0
    %215 = vmatpush2.msra.mxu0 0.0
    %216 = vmatprep.mubr.f32.mxu0 0.0
    %217 = vmatmul.mubr.f32.gmra.mxu0 %v147
    %v218 = vpop.f32.mrf.mxu0
    %v219 = vadd.f32 0.0, %v218
    %v220 = vpop.f32.mrf.mxu0
    %221 = vmatprep.mubr.f32.mxu0 0.0
    %222 = vmatmul.mubr.f32.gmra.mxu0 %v150
    %v223 = vpop.f32.mrf.mxu0
    %v224 = vadd.f32 0.0, %v223
    %v225 = vpop.f32.mrf.mxu0
    %226 = vdwg.mxu0
    %v228 = vsel %vm64, %v62, 0
    %v231 = vsel %vm64, %v63, 0
    %233 = vmatprep.subr.mxu0 0.0
    %234 = vmatpush1.msra.mxu0 0.0
    %235 = vmatprep.subr.mxu0 0.0
    %236 = vmatpush1.msra.mxu0 0.0
    %237 = vmatprep.subr.mxu0 0.0
    %238 = vmatpush1.msra.mxu0 0.0
    %239 = vmatprep.subr.mxu0 0.0
    %240 = vmatpush1.msra.mxu0 0.0
    %241 = vmatprep.subr.mxu0 0.0
    %242 = vmatpush1.msra.mxu0 0.0
    %243 = vmatprep.subr.mxu0 0.0
    %244 = vmatpush1.msra.mxu0 0.0
    %245 = vmatprep.subr.mxu0 0.0
    %246 = vmatpush1.msra.mxu0 0.0
    %247 = vmatprep.subr.mxu0 0.0
    %248 = vmatpush1.msra.mxu0 0.0
    %249 = vmatprep.subr.mxu0 0.0
    %250 = vmatpush1.msra.mxu0 0.0
    %251 = vmatprep.subr.mxu0 0.0
    %252 = vmatpush1.msra.mxu0 0.0
    %253 = vmatprep.subr.mxu0 0.0
    %254 = vmatpush1.msra.mxu0 0.0
    %255 = vmatprep.subr.mxu0 0.0
    %256 = vmatpush1.msra.mxu0 0.0
    %257 = vmatprep.subr.mxu0 0.0
    %258 = vmatpush1.msra.mxu0 %v32
    %259 = vmatprep.subr.mxu0 0.0
    %260 = vmatpush1.msra.mxu0 %v31
    %261 = vmatprep.subr.mxu0 0.0
    %262 = vmatpush1.msra.mxu0 %v30
    %263 = vmatprep.subr.mxu0 0.0
    %264 = vmatpush1.msra.mxu0 %v29
    %265 = vmatprep.subr.mxu0 0.0
    %266 = vmatpush2.msra.mxu0 0.0
    %267 = vmatprep.subr.mxu0 0.0
    %268 = vmatpush2.msra.mxu0 0.0
    %269 = vmatprep.subr.mxu0 0.0
    %270 = vmatpush2.msra.mxu0 0.0
    %271 = vmatprep.subr.mxu0 0.0
    %272 = vmatpush2.msra.mxu0 0.0
    %273 = vmatprep.subr.mxu0 0.0
    %274 = vmatpush2.msra.mxu0 0.0
    %275 = vmatprep.subr.mxu0 0.0
    %276 = vmatpush2.msra.mxu0 0.0
    %277 = vmatprep.subr.mxu0 0.0
    %278 = vmatpush2.msra.mxu0 0.0
    %279 = vmatprep.subr.mxu0 0.0
    %280 = vmatpush2.msra.mxu0 0.0
    %281 = vmatprep.subr.mxu0 0.0
    %282 = vmatpush2.msra.mxu0 0.0
    %283 = vmatprep.subr.mxu0 0.0
    %284 = vmatpush2.msra.mxu0 0.0
    %285 = vmatprep.subr.mxu0 0.0
    %286 = vmatpush2.msra.mxu0 0.0
    %287 = vmatprep.subr.mxu0 0.0
    %288 = vmatpush2.msra.mxu0 0.0
    %289 = vmatprep.subr.mxu0 0.0
    %290 = vmatpush2.msra.mxu0 0.0
    %291 = vmatprep.subr.mxu0 0.0
    %292 = vmatpush2.msra.mxu0 0.0
    %293 = vmatprep.subr.mxu0 0.0
    %294 = vmatpush2.msra.mxu0 0.0
    %295 = vmatprep.subr.mxu0 0.0
    %296 = vmatpush2.msra.mxu0 0.0
    %297 = vmatprep.mubr.f32.mxu0 0.0
    %298 = vmatmul.mubr.f32.gmra.mxu0 %v228
    %v299 = vpop.f32.mrf.mxu0
    %v300 = vadd.f32 0.0, %v299
    %v301 = vpop.f32.mrf.mxu0
    %302 = vmatprep.mubr.f32.mxu0 0.0
    %303 = vmatmul.mubr.f32.gmra.mxu0 %v231
    %v304 = vpop.f32.mrf.mxu0
    %v305 = vadd.f32 0.0, %v304
    %v306 = vpop.f32.mrf.mxu0
    %307 = vdwg.mxu0
    %vm308 = vcmask 64512
    %v310 = vsel %vm308, %v138, 0
    %v313 = vsel %vm308, %v219, 0
    %315 = vmatprep.subr.mxu0 0.0
    %316 = vmatpush1.xpose.msra.mxu0 0.0
    %317 = vmatprep.subr.mxu0 0.0
    %318 = vmatpush1.xpose.msra.mxu0 0.0
    %319 = vmatprep.subr.mxu0 0.0
    %320 = vmatpush1.xpose.msra.mxu0 0.0
    %321 = vmatprep.subr.mxu0 0.0
    %322 = vmatpush1.xpose.msra.mxu0 0.0
    %323 = vmatprep.subr.mxu0 0.0
    %324 = vmatpush1.xpose.msra.mxu0 0.0
    %325 = vmatprep.subr.mxu0 0.0
    %326 = vmatpush1.xpose.msra.mxu0 0.0
    %327 = vmatprep.subr.mxu0 0.0
    %328 = vmatpush1.xpose.msra.mxu0 0.0
    %329 = vmatprep.subr.mxu0 0.0
    %330 = vmatpush1.xpose.msra.mxu0 0.0
    %331 = vmatprep.subr.mxu0 0.0
    %332 = vmatpush1.xpose.msra.mxu0 0.0
    %333 = vmatprep.subr.mxu0 0.0
    %334 = vmatpush1.xpose.msra.mxu0 0.0
    %335 = vmatprep.subr.mxu0 0.0
    %336 = vmatpush1.xpose.msra.mxu0 0.0
    %337 = vmatprep.subr.mxu0 0.0
    %338 = vmatpush1.xpose.msra.mxu0 0.0
    %339 = vmatprep.subr.mxu0 0.0
    %340 = vmatpush1.xpose.msra.mxu0 0.0
    %341 = vmatprep.subr.mxu0 0.0
    %342 = vmatpush1.xpose.msra.mxu0 0.0
    %343 = vmatprep.subr.mxu0 0.0
    %344 = vmatpush1.xpose.msra.mxu0 0.0
    %345 = vmatprep.subr.mxu0 0.0
    %346 = vmatpush1.xpose.msra.mxu0 %v313
    %347 = vmatprep.subr.mxu0 0.0
    %348 = vmatpush2.xpose.msra.mxu0 0.0
    %349 = vmatprep.subr.mxu0 0.0
    %350 = vmatpush2.xpose.msra.mxu0 0.0
    %351 = vmatprep.subr.mxu0 0.0
    %352 = vmatpush2.xpose.msra.mxu0 0.0
    %353 = vmatprep.subr.mxu0 0.0
    %354 = vmatpush2.xpose.msra.mxu0 0.0
    %355 = vmatprep.subr.mxu0 0.0
    %356 = vmatpush2.xpose.msra.mxu0 0.0
    %357 = vmatprep.subr.mxu0 0.0
    %358 = vmatpush2.xpose.msra.mxu0 0.0
    %359 = vmatprep.subr.mxu0 0.0
    %360 = vmatpush2.xpose.msra.mxu0 0.0
    %361 = vmatprep.subr.mxu0 0.0
    %362 = vmatpush2.xpose.msra.mxu0 0.0
    %363 = vmatprep.subr.mxu0 0.0
    %364 = vmatpush2.xpose.msra.mxu0 0.0
    %365 = vmatprep.subr.mxu0 0.0
    %366 = vmatpush2.xpose.msra.mxu0 0.0
    %367 = vmatprep.subr.mxu0 0.0
    %368 = vmatpush2.xpose.msra.mxu0 0.0
    %369 = vmatprep.subr.mxu0 0.0
    %370 = vmatpush2.xpose.msra.mxu0 0.0
    %371 = vmatprep.subr.mxu0 0.0
    %372 = vmatpush2.xpose.msra.mxu0 0.0
    %373 = vmatprep.subr.mxu0 0.0
    %374 = vmatpush2.xpose.msra.mxu0 0.0
    %375 = vmatprep.subr.mxu0 0.0
    %376 = vmatpush2.xpose.msra.mxu0 0.0
    %377 = vmatprep.subr.mxu0 0.0
    %378 = vmatpush2.xpose.msra.mxu0 0.0
    %379 = vmatprep.mubr.f32.mxu0 0.0
    %380 = vmatmul.mubr.f32.gmra.mxu0 %v310
    %v381 = vpop.f32.mrf.mxu0
    %v382 = vadd.f32 0.0, %v381
    %v383 = vpop.f32.mrf.mxu0
    %384 = vdwg.mxu0
    %v386 = vsel %vm308, %v143, 0
    %v389 = vsel %vm308, %v224, 0
    %391 = vmatprep.subr.mxu0 0.0
    %392 = vmatpush1.xpose.msra.mxu0 0.0
    %393 = vmatprep.subr.mxu0 0.0
    %394 = vmatpush1.xpose.msra.mxu0 0.0
    %395 = vmatprep.subr.mxu0 0.0
    %396 = vmatpush1.xpose.msra.mxu0 0.0
    %397 = vmatprep.subr.mxu0 0.0
    %398 = vmatpush1.xpose.msra.mxu0 0.0
    %399 = vmatprep.subr.mxu0 0.0
    %400 = vmatpush1.xpose.msra.mxu0 0.0
    %401 = vmatprep.subr.mxu0 0.0
    %402 = vmatpush1.xpose.msra.mxu0 0.0
    %403 = vmatprep.subr.mxu0 0.0
    %404 = vmatpush1.xpose.msra.mxu0 0.0
    %405 = vmatprep.subr.mxu0 0.0
    %406 = vmatpush1.xpose.msra.mxu0 0.0
    %407 = vmatprep.subr.mxu0 0.0
    %408 = vmatpush1.xpose.msra.mxu0 0.0
    %409 = vmatprep.subr.mxu0 0.0
    %410 = vmatpush1.xpose.msra.mxu0 0.0
    %411 = vmatprep.subr.mxu0 0.0
    %412 = vmatpush1.xpose.msra.mxu0 0.0
    %413 = vmatprep.subr.mxu0 0.0
    %414 = vmatpush1.xpose.msra.mxu0 0.0
    %415 = vmatprep.subr.mxu0 0.0
    %416 = vmatpush1.xpose.msra.mxu0 0.0
    %417 = vmatprep.subr.mxu0 0.0
    %418 = vmatpush1.xpose.msra.mxu0 0.0
    %419 = vmatprep.subr.mxu0 0.0
    %420 = vmatpush1.xpose.msra.mxu0 0.0
    %421 = vmatprep.subr.mxu0 0.0
    %422 = vmatpush1.xpose.msra.mxu0 %v389
    %423 = vmatprep.subr.mxu0 0.0
    %424 = vmatpush2.xpose.msra.mxu0 0.0
    %425 = vmatprep.subr.mxu0 0.0
    %426 = vmatpush2.xpose.msra.mxu0 0.0
    %427 = vmatprep.subr.mxu0 0.0
    %428 = vmatpush2.xpose.msra.mxu0 0.0
    %429 = vmatprep.subr.mxu0 0.0
    %430 = vmatpush2.xpose.msra.mxu0 0.0
    %431 = vmatprep.subr.mxu0 0.0
    %432 = vmatpush2.xpose.msra.mxu0 0.0
    %433 = vmatprep.subr.mxu0 0.0
    %434 = vmatpush2.xpose.msra.mxu0 0.0
    %435 = vmatprep.subr.mxu0 0.0
    %436 = vmatpush2.xpose.msra.mxu0 0.0
    %437 = vmatprep.subr.mxu0 0.0
    %438 = vmatpush2.xpose.msra.mxu0 0.0
    %439 = vmatprep.subr.mxu0 0.0
    %440 = vmatpush2.xpose.msra.mxu0 0.0
    %441 = vmatprep.subr.mxu0 0.0
    %442 = vmatpush2.xpose.msra.mxu0 0.0
    %443 = vmatprep.subr.mxu0 0.0
    %444 = vmatpush2.xpose.msra.mxu0 0.0
    %445 = vmatprep.subr.mxu0 0.0
    %446 = vmatpush2.xpose.msra.mxu0 0.0
    %447 = vmatprep.subr.mxu0 0.0
    %448 = vmatpush2.xpose.msra.mxu0 0.0
    %449 = vmatprep.subr.mxu0 0.0
    %450 = vmatpush2.xpose.msra.mxu0 0.0
    %451 = vmatprep.subr.mxu0 0.0
    %452 = vmatpush2.xpose.msra.mxu0 0.0
    %453 = vmatprep.subr.mxu0 0.0
    %454 = vmatpush2.xpose.msra.mxu0 0.0
    %455 = vmatprep.mubr.f32.mxu0 0.0
    %456 = vmatmul.mubr.f32.gmra.mxu0 %v386
    %v457 = vpop.f32.mrf.mxu0
    %v458 = vadd.f32 0.0, %v457
    %v459 = vpop.f32.mrf.mxu0
    %460 = vdwg.mxu0
    %v461 = vsel %vm308, %v382, -inf
    %462 = vmax.xlane.f32.xlu0 %v461
    %v463 = vpop.xlane.xlu0 %462
    %v464 = vsel %vm308, %v458, -inf
    %465 = vmax.xlane.f32.xlu0 %v464
    %v466 = vpop.xlane.xlu0 %465
    %v467 = vsub.f32 %v382, %v463
    %v468 = vsub.f32 %v458, %v466
    %v469 = vmul.f32 %v467, 1.442695
    %v470 = vpow.pop %v469
    %v471 = vmul.f32 %v468, 1.442695
    %v472 = vpow.pop %v471
    %v473 = vsel %vm308, %v470, 0.0
    %474 = vadd.xlane.f32.xlu0 %v473
    %v475 = vpop.xlane.xlu0 %474
    %v476 = vsel %vm308, %v472, 0.0
    %477 = vadd.xlane.f32.xlu0 %v476
    %v478 = vpop.xlane.xlu0 %477
    %v479 = vrcp.pop %v475
    %v480 = vrcp.pop %v478
    %v481 = vmul.f32 %v470, %v479
    %v482 = vmul.f32 %v472, %v480
    %v484 = vsel %vm308, %v481, 0
    %486 = vmatprep.subr.mxu0 0.0
    %487 = vmatpush1.msra.mxu0 0.0
    %488 = vmatprep.subr.mxu0 0.0
    %489 = vmatpush1.msra.mxu0 0.0
    %490 = vmatprep.subr.mxu0 0.0
    %491 = vmatpush1.msra.mxu0 0.0
    %492 = vmatprep.subr.mxu0 0.0
    %493 = vmatpush1.msra.mxu0 0.0
    %494 = vmatprep.subr.mxu0 0.0
    %495 = vmatpush1.msra.mxu0 0.0
    %496 = vmatprep.subr.mxu0 0.0
    %497 = vmatpush1.msra.mxu0 0.0
    %498 = vmatprep.subr.mxu0 0.0
    %499 = vmatpush1.msra.mxu0 0.0
    %500 = vmatprep.subr.mxu0 0.0
    %501 = vmatpush1.msra.mxu0 0.0
    %502 = vmatprep.subr.mxu0 0.0
    %503 = vmatpush1.msra.mxu0 0.0
    %504 = vmatprep.subr.mxu0 0.0
    %505 = vmatpush1.msra.mxu0 0.0
    %506 = vmatprep.subr.mxu0 0.0
    %507 = vmatpush1.msra.mxu0 0.0
    %508 = vmatprep.subr.mxu0 0.0
    %509 = vmatpush1.msra.mxu0 0.0
    %510 = vmatprep.subr.mxu0 0.0
    %511 = vmatpush1.msra.mxu0 0.0
    %512 = vmatprep.subr.mxu0 0.0
    %513 = vmatpush1.msra.mxu0 0.0
    %514 = vmatprep.subr.mxu0 0.0
    %515 = vmatpush1.msra.mxu0 0.0
    %516 = vmatprep.subr.mxu0 0.0
    %517 = vmatpush1.msra.mxu0 %v300
    %518 = vmatprep.subr.mxu0 0.0
    %519 = vmatpush2.msra.mxu0 0.0
    %520 = vmatprep.subr.mxu0 0.0
    %521 = vmatpush2.msra.mxu0 0.0
    %522 = vmatprep.subr.mxu0 0.0
    %523 = vmatpush2.msra.mxu0 0.0
    %524 = vmatprep.subr.mxu0 0.0
    %525 = vmatpush2.msra.mxu0 0.0
    %526 = vmatprep.subr.mxu0 0.0
    %527 = vmatpush2.msra.mxu0 0.0
    %528 = vmatprep.subr.mxu0 0.0
    %529 = vmatpush2.msra.mxu0 0.0
    %530 = vmatprep.subr.mxu0 0.0
    %531 = vmatpush2.msra.mxu0 0.0
    %532 = vmatprep.subr.mxu0 0.0
    %533 = vmatpush2.msra.mxu0 0.0
    %534 = vmatprep.subr.mxu0 0.0
    %535 = vmatpush2.msra.mxu0 0.0
    %536 = vmatprep.subr.mxu0 0.0
    %537 = vmatpush2.msra.mxu0 0.0
    %538 = vmatprep.subr.mxu0 0.0
    %539 = vmatpush2.msra.mxu0 0.0
    %540 = vmatprep.subr.mxu0 0.0
    %541 = vmatpush2.msra.mxu0 0.0
    %542 = vmatprep.subr.mxu0 0.0
    %543 = vmatpush2.msra.mxu0 0.0
    %544 = vmatprep.subr.mxu0 0.0
    %545 = vmatpush2.msra.mxu0 0.0
    %546 = vmatprep.subr.mxu0 0.0
    %547 = vmatpush2.msra.mxu0 0.0
    %548 = vmatprep.subr.mxu0 0.0
    %549 = vmatpush2.msra.mxu0 0.0
    %550 = vmatprep.mubr.f32.mxu0 0.0
    %551 = vmatmul.mubr.f32.gmra.mxu0 %v484
    %v552 = vpop.f32.mrf.mxu0
    %v553 = vadd.f32 0.0, %v552
    %v554 = vpop.f32.mrf.mxu0
    %555 = vdwg.mxu0
    %v557 = vsel %vm308, %v482, 0
    %559 = vmatprep.subr.mxu0 0.0
    %560 = vmatpush1.msra.mxu0 0.0
    %561 = vmatprep.subr.mxu0 0.0
    %562 = vmatpush1.msra.mxu0 0.0
    %563 = vmatprep.subr.mxu0 0.0
    %564 = vmatpush1.msra.mxu0 0.0
    %565 = vmatprep.subr.mxu0 0.0
    %566 = vmatpush1.msra.mxu0 0.0
    %567 = vmatprep.subr.mxu0 0.0
    %568 = vmatpush1.msra.mxu0 0.0
    %569 = vmatprep.subr.mxu0 0.0
    %570 = vmatpush1.msra.mxu0 0.0
    %571 = vmatprep.subr.mxu0 0.0
    %572 = vmatpush1.msra.mxu0 0.0
    %573 = vmatprep.subr.mxu0 0.0
    %574 = vmatpush1.msra.mxu0 0.0
    %575 = vmatprep.subr.mxu0 0.0
    %576 = vmatpush1.msra.mxu0 0.0
    %577 = vmatprep.subr.mxu0 0.0
    %578 = vmatpush1.msra.mxu0 0.0
    %579 = vmatprep.subr.mxu0 0.0
    %580 = vmatpush1.msra.mxu0 0.0
    %581 = vmatprep.subr.mxu0 0.0
    %582 = vmatpush1.msra.mxu0 0.0
    %583 = vmatprep.subr.mxu0 0.0
    %584 = vmatpush1.msra.mxu0 0.0
    %585 = vmatprep.subr.mxu0 0.0
    %586 = vmatpush1.msra.mxu0 0.0
    %587 = vmatprep.subr.mxu0 0.0
    %588 = vmatpush1.msra.mxu0 0.0
    %589 = vmatprep.subr.mxu0 0.0
    %590 = vmatpush1.msra.mxu0 %v305
    %591 = vmatprep.subr.mxu0 0.0
    %592 = vmatpush2.msra.mxu0 0.0
    %593 = vmatprep.subr.mxu0 0.0
    %594 = vmatpush2.msra.mxu0 0.0
    %595 = vmatprep.subr.mxu0 0.0
    %596 = vmatpush2.msra.mxu0 0.0
    %597 = vmatprep.subr.mxu0 0.0
    %598 = vmatpush2.msra.mxu0 0.0
    %599 = vmatprep.subr.mxu0 0.0
    %600 = vmatpush2.msra.mxu0 0.0
    %601 = vmatprep.subr.mxu0 0.0
    %602 = vmatpush2.msra.mxu0 0.0
    %603 = vmatprep.subr.mxu0 0.0
    %604 = vmatpush2.msra.mxu0 0.0
    %605 = vmatprep.subr.mxu0 0.0
    %606 = vmatpush2.msra.mxu0 0.0
    %607 = vmatprep.subr.mxu0 0.0
    %608 = vmatpush2.msra.mxu0 0.0
    %609 = vmatprep.subr.mxu0 0.0
    %610 = vmatpush2.msra.mxu0 0.0
    %611 = vmatprep.subr.mxu0 0.0
    %612 = vmatpush2.msra.mxu0 0.0
    %613 = vmatprep.subr.mxu0 0.0
    %614 = vmatpush2.msra.mxu0 0.0
    %615 = vmatprep.subr.mxu0 0.0
    %616 = vmatpush2.msra.mxu0 0.0
    %617 = vmatprep.subr.mxu0 0.0
    %618 = vmatpush2.msra.mxu0 0.0
    %619 = vmatprep.subr.mxu0 0.0
    %620 = vmatpush2.msra.mxu0 0.0
    %621 = vmatprep.subr.mxu0 0.0
    %622 = vmatpush2.msra.mxu0 0.0
    %623 = vmatprep.mubr.f32.mxu0 0.0
    %624 = vmatmul.mubr.f32.gmra.mxu0 %v557
    %v625 = vpop.f32.mrf.mxu0
    %v626 = vadd.f32 0.0, %v625
    %v627 = vpop.f32.mrf.mxu0
    %628 = vdwg.mxu0
    %629 = vrot.lane.b32.xlu0 %v138, 120
    %v630 = vpop.permute.xlu0 %629
    %631 = vrot.lane.b32.xlu0 %v219, 120
    %v632 = vpop.permute.xlu0 %631
    %v633 = vsel %vm308, %v630, 0
    %v635 = vsel %vm308, %v632, 0
    %637 = vmatprep.subr.mxu0 0.0
    %638 = vmatpush1.xpose.msra.mxu0 0.0
    %639 = vmatprep.subr.mxu0 0.0
    %640 = vmatpush1.xpose.msra.mxu0 0.0
    %641 = vmatprep.subr.mxu0 0.0
    %642 = vmatpush1.xpose.msra.mxu0 0.0
    %643 = vmatprep.subr.mxu0 0.0
    %644 = vmatpush1.xpose.msra.mxu0 0.0
    %645 = vmatprep.subr.mxu0 0.0
    %646 = vmatpush1.xpose.msra.mxu0 0.0
    %647 = vmatprep.subr.mxu0 0.0
    %648 = vmatpush1.xpose.msra.mxu0 0.0
    %649 = vmatprep.subr.mxu0 0.0
    %650 = vmatpush1.xpose.msra.mxu0 0.0
    %651 = vmatprep.subr.mxu0 0.0
    %652 = vmatpush1.xpose.msra.mxu0 0.0
    %653 = vmatprep.subr.mxu0 0.0
    %654 = vmatpush1.xpose.msra.mxu0 0.0
    %655 = vmatprep.subr.mxu0 0.0
    %656 = vmatpush1.xpose.msra.mxu0 0.0
    %657 = vmatprep.subr.mxu0 0.0
    %658 = vmatpush1.xpose.msra.mxu0 0.0
    %659 = vmatprep.subr.mxu0 0.0
    %660 = vmatpush1.xpose.msra.mxu0 0.0
    %661 = vmatprep.subr.mxu0 0.0
    %662 = vmatpush1.xpose.msra.mxu0 0.0
    %663 = vmatprep.subr.mxu0 0.0
    %664 = vmatpush1.xpose.msra.mxu0 0.0
    %665 = vmatprep.subr.mxu0 0.0
    %666 = vmatpush1.xpose.msra.mxu0 0.0
    %667 = vmatprep.subr.mxu0 0.0
    %668 = vmatpush1.xpose.msra.mxu0 %v635
    %669 = vmatprep.subr.mxu0 0.0
    %670 = vmatpush2.xpose.msra.mxu0 0.0
    %671 = vmatprep.subr.mxu0 0.0
    %672 = vmatpush2.xpose.msra.mxu0 0.0
    %673 = vmatprep.subr.mxu0 0.0
    %674 = vmatpush2.xpose.msra.mxu0 0.0
    %675 = vmatprep.subr.mxu0 0.0
    %676 = vmatpush2.xpose.msra.mxu0 0.0
    %677 = vmatprep.subr.mxu0 0.0
    %678 = vmatpush2.xpose.msra.mxu0 0.0
    %679 = vmatprep.subr.mxu0 0.0
    %680 = vmatpush2.xpose.msra.mxu0 0.0
    %681 = vmatprep.subr.mxu0 0.0
    %682 = vmatpush2.xpose.msra.mxu0 0.0
    %683 = vmatprep.subr.mxu0 0.0
    %684 = vmatpush2.xpose.msra.mxu0 0.0
    %685 = vmatprep.subr.mxu0 0.0
    %686 = vmatpush2.xpose.msra.mxu0 0.0
    %687 = vmatprep.subr.mxu0 0.0
    %688 = vmatpush2.xpose.msra.mxu0 0.0
    %689 = vmatprep.subr.mxu0 0.0
    %690 = vmatpush2.xpose.msra.mxu0 0.0
    %691 = vmatprep.subr.mxu0 0.0
    %692 = vmatpush2.xpose.msra.mxu0 0.0
    %693 = vmatprep.subr.mxu0 0.0
    %694 = vmatpush2.xpose.msra.mxu0 0.0
    %695 = vmatprep.subr.mxu0 0.0
    %696 = vmatpush2.xpose.msra.mxu0 0.0
    %697 = vmatprep.subr.mxu0 0.0
    %698 = vmatpush2.xpose.msra.mxu0 0.0
    %699 = vmatprep.subr.mxu0 0.0
    %700 = vmatpush2.xpose.msra.mxu0 0.0
    %701 = vmatprep.mubr.f32.mxu0 0.0
    %702 = vmatmul.mubr.f32.gmra.mxu0 %v633
    %v703 = vpop.f32.mrf.mxu0
    %v704 = vadd.f32 0.0, %v703
    %v705 = vpop.f32.mrf.mxu0
    %706 = vdwg.mxu0
    %707 = vrot.lane.b32.xlu0 %v143, 120
    %v708 = vpop.permute.xlu0 %707
    %709 = vrot.lane.b32.xlu0 %v224, 120
    %v710 = vpop.permute.xlu0 %709
    %v711 = vsel %vm308, %v708, 0
    %v713 = vsel %vm308, %v710, 0
    %715 = vmatprep.subr.mxu0 0.0
    %716 = vmatpush1.xpose.msra.mxu0 0.0
    %717 = vmatprep.subr.mxu0 0.0
    %718 = vmatpush1.xpose.msra.mxu0 0.0
    %719 = vmatprep.subr.mxu0 0.0
    %720 = vmatpush1.xpose.msra.mxu0 0.0
    %721 = vmatprep.subr.mxu0 0.0
    %722 = vmatpush1.xpose.msra.mxu0 0.0
    %723 = vmatprep.subr.mxu0 0.0
    %724 = vmatpush1.xpose.msra.mxu0 0.0
    %725 = vmatprep.subr.mxu0 0.0
    %726 = vmatpush1.xpose.msra.mxu0 0.0
    %727 = vmatprep.subr.mxu0 0.0
    %728 = vmatpush1.xpose.msra.mxu0 0.0
    %729 = vmatprep.subr.mxu0 0.0
    %730 = vmatpush1.xpose.msra.mxu0 0.0
    %731 = vmatprep.subr.mxu0 0.0
    %732 = vmatpush1.xpose.msra.mxu0 0.0
    %733 = vmatprep.subr.mxu0 0.0
    %734 = vmatpush1.xpose.msra.mxu0 0.0
    %735 = vmatprep.subr.mxu0 0.0
    %736 = vmatpush1.xpose.msra.mxu0 0.0
    %737 = vmatprep.subr.mxu0 0.0
    %738 = vmatpush1.xpose.msra.mxu0 0.0
    %739 = vmatprep.subr.mxu0 0.0
    %740 = vmatpush1.xpose.msra.mxu0 0.0
    %741 = vmatprep.subr.mxu0 0.0
    %742 = vmatpush1.xpose.msra.mxu0 0.0
    %743 = vmatprep.subr.mxu0 0.0
    %744 = vmatpush1.xpose.msra.mxu0 0.0
    %745 = vmatprep.subr.mxu0 0.0
    %746 = vmatpush1.xpose.msra.mxu0 %v713
    %747 = vmatprep.subr.mxu0 0.0
    %748 = vmatpush2.xpose.msra.mxu0 0.0
    %749 = vmatprep.subr.mxu0 0.0
    %750 = vmatpush2.xpose.msra.mxu0 0.0
    %751 = vmatprep.subr.mxu0 0.0
    %752 = vmatpush2.xpose.msra.mxu0 0.0
    %753 = vmatprep.subr.mxu0 0.0
    %754 = vmatpush2.xpose.msra.mxu0 0.0
    %755 = vmatprep.subr.mxu0 0.0
    %756 = vmatpush2.xpose.msra.mxu0 0.0
    %757 = vmatprep.subr.mxu0 0.0
    %758 = vmatpush2.xpose.msra.mxu0 0.0
    %759 = vmatprep.subr.mxu0 0.0
    %760 = vmatpush2.xpose.msra.mxu0 0.0
    %761 = vmatprep.subr.mxu0 0.0
    %762 = vmatpush2.xpose.msra.mxu0 0.0
    %763 = vmatprep.subr.mxu0 0.0
    %764 = vmatpush2.xpose.msra.mxu0 0.0
    %765 = vmatprep.subr.mxu0 0.0
    %766 = vmatpush2.xpose.msra.mxu0 0.0
    %767 = vmatprep.subr.mxu0 0.0
    %768 = vmatpush2.xpose.msra.mxu0 0.0
    %769 = vmatprep.subr.mxu0 0.0
    %770 = vmatpush2.xpose.msra.mxu0 0.0
    %771 = vmatprep.subr.mxu0 0.0
    %772 = vmatpush2.xpose.msra.mxu0 0.0
    %773 = vmatprep.subr.mxu0 0.0
    %774 = vmatpush2.xpose.msra.mxu0 0.0
    %775 = vmatprep.subr.mxu0 0.0
    %776 = vmatpush2.xpose.msra.mxu0 0.0
    %777 = vmatprep.subr.mxu0 0.0
    %778 = vmatpush2.xpose.msra.mxu0 0.0
    %779 = vmatprep.mubr.f32.mxu0 0.0
    %780 = vmatmul.mubr.f32.gmra.mxu0 %v711
    %v781 = vpop.f32.mrf.mxu0
    %v782 = vadd.f32 0.0, %v781
    %v783 = vpop.f32.mrf.mxu0
    %784 = vdwg.mxu0
    %v785 = vsel %vm308, %v704, -inf
    %786 = vmax.xlane.f32.xlu0 %v785
    %v787 = vpop.xlane.xlu0 %786
    %v788 = vsel %vm308, %v782, -inf
    %789 = vmax.xlane.f32.xlu0 %v788
    %v790 = vpop.xlane.xlu0 %789
    %v791 = vsub.f32 %v704, %v787
    %v792 = vsub.f32 %v782, %v790
    %v793 = vmul.f32 %v791, 1.442695
    %v794 = vpow.pop %v793
    %v795 = vmul.f32 %v792, 1.442695
    %v796 = vpow.pop %v795
    %v797 = vsel %vm308, %v794, 0.0
    %798 = vadd.xlane.f32.xlu0 %v797
    %v799 = vpop.xlane.xlu0 %798
    %v800 = vsel %vm308, %v796, 0.0
    %801 = vadd.xlane.f32.xlu0 %v800
    %v802 = vpop.xlane.xlu0 %801
    %v803 = vrcp.pop %v799
    %v804 = vrcp.pop %v802
    %v805 = vmul.f32 %v794, %v803
    %v806 = vmul.f32 %v796, %v804
    %808 = vrot.lane.b32.xlu0 %v300, 120
    %v809 = vpop.permute.xlu0 %808
    %v812 = vsel %vm308, %v805, 0
    %814 = vmatprep.subr.mxu0 0.0
    %815 = vmatpush1.msra.mxu0 0.0
    %816 = vmatprep.subr.mxu0 0.0
    %817 = vmatpush1.msra.mxu0 0.0
    %818 = vmatprep.subr.mxu0 0.0
    %819 = vmatpush1.msra.mxu0 0.0
    %820 = vmatprep.subr.mxu0 0.0
    %821 = vmatpush1.msra.mxu0 0.0
    %822 = vmatprep.subr.mxu0 0.0
    %823 = vmatpush1.msra.mxu0 0.0
    %824 = vmatprep.subr.mxu0 0.0
    %825 = vmatpush1.msra.mxu0 0.0
    %826 = vmatprep.subr.mxu0 0.0
    %827 = vmatpush1.msra.mxu0 0.0
    %828 = vmatprep.subr.mxu0 0.0
    %829 = vmatpush1.msra.mxu0 0.0
    %830 = vmatprep.subr.mxu0 0.0
    %831 = vmatpush1.msra.mxu0 0.0
    %832 = vmatprep.subr.mxu0 0.0
    %833 = vmatpush1.msra.mxu0 0.0
    %834 = vmatprep.subr.mxu0 0.0
    %835 = vmatpush1.msra.mxu0 0.0
    %836 = vmatprep.subr.mxu0 0.0
    %837 = vmatpush1.msra.mxu0 0.0
    %838 = vmatprep.subr.mxu0 0.0
    %839 = vmatpush1.msra.mxu0 0.0
    %840 = vmatprep.subr.mxu0 0.0
    %841 = vmatpush1.msra.mxu0 0.0
    %842 = vmatprep.subr.mxu0 0.0
    %843 = vmatpush1.msra.mxu0 0.0
    %844 = vmatprep.subr.mxu0 0.0
    %845 = vmatpush1.msra.mxu0 %v809
    %846 = vmatprep.subr.mxu0 0.0
    %847 = vmatpush2.msra.mxu0 0.0
    %848 = vmatprep.subr.mxu0 0.0
    %849 = vmatpush2.msra.mxu0 0.0
    %850 = vmatprep.subr.mxu0 0.0
    %851 = vmatpush2.msra.mxu0 0.0
    %852 = vmatprep.subr.mxu0 0.0
    %853 = vmatpush2.msra.mxu0 0.0
    %854 = vmatprep.subr.mxu0 0.0
    %855 = vmatpush2.msra.mxu0 0.0
    %856 = vmatprep.subr.mxu0 0.0
    %857 = vmatpush2.msra.mxu0 0.0
    %858 = vmatprep.subr.mxu0 0.0
    %859 = vmatpush2.msra.mxu0 0.0
    %860 = vmatprep.subr.mxu0 0.0
    %861 = vmatpush2.msra.mxu0 0.0
    %862 = vmatprep.subr.mxu0 0.0
    %863 = vmatpush2.msra.mxu0 0.0
    %864 = vmatprep.subr.mxu0 0.0
    %865 = vmatpush2.msra.mxu0 0.0
    %866 = vmatprep.subr.mxu0 0.0
    %867 = vmatpush2.msra.mxu0 0.0
    %868 = vmatprep.subr.mxu0 0.0
    %869 = vmatpush2.msra.mxu0 0.0
    %870 = vmatprep.subr.mxu0 0.0
    %871 = vmatpush2.msra.mxu0 0.0
    %872 = vmatprep.subr.mxu0 0.0
    %873 = vmatpush2.msra.mxu0 0.0
    %874 = vmatprep.subr.mxu0 0.0
    %875 = vmatpush2.msra.mxu0 0.0
    %876 = vmatprep.subr.mxu0 0.0
    %877 = vmatpush2.msra.mxu0 0.0
    %878 = vmatprep.mubr.f32.mxu0 0.0
    %879 = vmatmul.mubr.f32.gmra.mxu0 %v812
    %v880 = vpop.f32.mrf.mxu0
    %v881 = vadd.f32 0.0, %v880
    %v882 = vpop.f32.mrf.mxu0
    %883 = vdwg.mxu0
    %885 = vrot.lane.b32.xlu0 %v305, 120
    %v886 = vpop.permute.xlu0 %885
    %v889 = vsel %vm308, %v806, 0
    %891 = vmatprep.subr.mxu0 0.0
    %892 = vmatpush1.msra.mxu0 0.0
    %893 = vmatprep.subr.mxu0 0.0
    %894 = vmatpush1.msra.mxu0 0.0
    %895 = vmatprep.subr.mxu0 0.0
    %896 = vmatpush1.msra.mxu0 0.0
    %897 = vmatprep.subr.mxu0 0.0
    %898 = vmatpush1.msra.mxu0 0.0
    %899 = vmatprep.subr.mxu0 0.0
    %900 = vmatpush1.msra.mxu0 0.0
    %901 = vmatprep.subr.mxu0 0.0
    %902 = vmatpush1.msra.mxu0 0.0
    %903 = vmatprep.subr.mxu0 0.0
    %904 = vmatpush1.msra.mxu0 0.0
    %905 = vmatprep.subr.mxu0 0.0
    %906 = vmatpush1.msra.mxu0 0.0
    %907 = vmatprep.subr.mxu0 0.0
    %908 = vmatpush1.msra.mxu0 0.0
    %909 = vmatprep.subr.mxu0 0.0
    %910 = vmatpush1.msra.mxu0 0.0
    %911 = vmatprep.subr.mxu0 0.0
    %912 = vmatpush1.msra.mxu0 0.0
    %913 = vmatprep.subr.mxu0 0.0
    %914 = vmatpush1.msra.mxu0 0.0
    %915 = vmatprep.subr.mxu0 0.0
    %916 = vmatpush1.msra.mxu0 0.0
    %917 = vmatprep.subr.mxu0 0.0
    %918 = vmatpush1.msra.mxu0 0.0
    %919 = vmatprep.subr.mxu0 0.0
    %920 = vmatpush1.msra.mxu0 0.0
    %921 = vmatprep.subr.mxu0 0.0
    %922 = vmatpush1.msra.mxu0 %v886
    %923 = vmatprep.subr.mxu0 0.0
    %924 = vmatpush2.msra.mxu0 0.0
    %925 = vmatprep.subr.mxu0 0.0
    %926 = vmatpush2.msra.mxu0 0.0
    %927 = vmatprep.subr.mxu0 0.0
    %928 = vmatpush2.msra.mxu0 0.0
    %929 = vmatprep.subr.mxu0 0.0
    %930 = vmatpush2.msra.mxu0 0.0
    %931 = vmatprep.subr.mxu0 0.0
    %932 = vmatpush2.msra.mxu0 0.0
    %933 = vmatprep.subr.mxu0 0.0
    %934 = vmatpush2.msra.mxu0 0.0
    %935 = vmatprep.subr.mxu0 0.0
    %936 = vmatpush2.msra.mxu0 0.0
    %937 = vmatprep.subr.mxu0 0.0
    %938 = vmatpush2.msra.mxu0 0.0
    %939 = vmatprep.subr.mxu0 0.0
    %940 = vmatpush2.msra.mxu0 0.0
    %941 = vmatprep.subr.mxu0 0.0
    %942 = vmatpush2.msra.mxu0 0.0
    %943 = vmatprep.subr.mxu0 0.0
    %944 = vmatpush2.msra.mxu0 0.0
    %945 = vmatprep.subr.mxu0 0.0
    %946 = vmatpush2.msra.mxu0 0.0
    %947 = vmatprep.subr.mxu0 0.0
    %948 = vmatpush2.msra.mxu0 0.0
    %949 = vmatprep.subr.mxu0 0.0
    %950 = vmatpush2.msra.mxu0 0.0
    %951 = vmatprep.subr.mxu0 0.0
    %952 = vmatpush2.msra.mxu0 0.0
    %953 = vmatprep.subr.mxu0 0.0
    %954 = vmatpush2.msra.mxu0 0.0
    %955 = vmatprep.mubr.f32.mxu0 0.0
    %956 = vmatmul.mubr.f32.gmra.mxu0 %v889
    %v957 = vpop.f32.mrf.mxu0
    %v958 = vadd.f32 0.0, %v957
    %v959 = vpop.f32.mrf.mxu0
    %960 = vdwg.mxu0
    %961 = vrot.lane.b32.xlu0 %v138, 112
    %v962 = vpop.permute.xlu0 %961
    %963 = vrot.lane.b32.xlu0 %v219, 112
    %v964 = vpop.permute.xlu0 %963
    %v965 = vsel %vm308, %v962, 0
    %v967 = vsel %vm308, %v964, 0
    %969 = vmatprep.subr.mxu0 0.0
    %970 = vmatpush1.xpose.msra.mxu0 0.0
    %971 = vmatprep.subr.mxu0 0.0
    %972 = vmatpush1.xpose.msra.mxu0 0.0
    %973 = vmatprep.subr.mxu0 0.0
    %974 = vmatpush1.xpose.msra.mxu0 0.0
    %975 = vmatprep.subr.mxu0 0.0
    %976 = vmatpush1.xpose.msra.mxu0 0.0
    %977 = vmatprep.subr.mxu0 0.0
    %978 = vmatpush1.xpose.msra.mxu0 0.0
    %979 = vmatprep.subr.mxu0 0.0
    %980 = vmatpush1.xpose.msra.mxu0 0.0
    %981 = vmatprep.subr.mxu0 0.0
    %982 = vmatpush1.xpose.msra.mxu0 0.0
    %983 = vmatprep.subr.mxu0 0.0
    %984 = vmatpush1.xpose.msra.mxu0 0.0
    %985 = vmatprep.subr.mxu0 0.0
    %986 = vmatpush1.xpose.msra.mxu0 0.0
    %987 = vmatprep.subr.mxu0 0.0
    %988 = vmatpush1.xpose.msra.mxu0 0.0
    %989 = vmatprep.subr.mxu0 0.0
    %990 = vmatpush1.xpose.msra.mxu0 0.0
    %991 = vmatprep.subr.mxu0 0.0
    %992 = vmatpush1.xpose.msra.mxu0 0.0
    %993 = vmatprep.subr.mxu0 0.0
    %994 = vmatpush1.xpose.msra.mxu0 0.0
    %995 = vmatprep.subr.mxu0 0.0
    %996 = vmatpush1.xpose.msra.mxu0 0.0
    %997 = vmatprep.subr.mxu0 0.0
    %998 = vmatpush1.xpose.msra.mxu0 0.0
    %999 = vmatprep.subr.mxu0 0.0
    %1000 = vmatpush1.xpose.msra.mxu0 %v967
    %1001 = vmatprep.subr.mxu0 0.0
    %1002 = vmatpush2.xpose.msra.mxu0 0.0
    %1003 = vmatprep.subr.mxu0 0.0
    %1004 = vmatpush2.xpose.msra.mxu0 0.0
    %1005 = vmatprep.subr.mxu0 0.0
    %1006 = vmatpush2.xpose.msra.mxu0 0.0
    %1007 = vmatprep.subr.mxu0 0.0
    %1008 = vmatpush2.xpose.msra.mxu0 0.0
    %1009 = vmatprep.subr.mxu0 0.0
    %1010 = vmatpush2.xpose.msra.mxu0 0.0
    %1011 = vmatprep.subr.mxu0 0.0
    %1012 = vmatpush2.xpose.msra.mxu0 0.0
    %1013 = vmatprep.subr.mxu0 0.0
    %1014 = vmatpush2.xpose.msra.mxu0 0.0
    %1015 = vmatprep.subr.mxu0 0.0
    %1016 = vmatpush2.xpose.msra.mxu0 0.0
    %1017 = vmatprep.subr.mxu0 0.0
    %1018 = vmatpush2.xpose.msra.mxu0 0.0
    %1019 = vmatprep.subr.mxu0 0.0
    %1020 = vmatpush2.xpose.msra.mxu0 0.0
    %1021 = vmatprep.subr.mxu0 0.0
    %1022 = vmatpush2.xpose.msra.mxu0 0.0
    %1023 = vmatprep.subr.mxu0 0.0
    %1024 = vmatpush2.xpose.msra.mxu0 0.0
    %1025 = vmatprep.subr.mxu0 0.0
    %1026 = vmatpush2.xpose.msra.mxu0 0.0
    %1027 = vmatprep.subr.mxu0 0.0
    %1028 = vmatpush2.xpose.msra.mxu0 0.0
    %1029 = vmatprep.subr.mxu0 0.0
    %1030 = vmatpush2.xpose.msra.mxu0 0.0
    %1031 = vmatprep.subr.mxu0 0.0
    %1032 = vmatpush2.xpose.msra.mxu0 0.0
    %1033 = vmatprep.mubr.f32.mxu0 0.0
    %1034 = vmatmul.mubr.f32.gmra.mxu0 %v965
    %v1035 = vpop.f32.mrf.mxu0
    %v1036 = vadd.f32 0.0, %v1035
    %v1037 = vpop.f32.mrf.mxu0
    %1038 = vdwg.mxu0
    %1039 = vrot.lane.b32.xlu0 %v143, 112
    %v1040 = vpop.permute.xlu0 %1039
    %1041 = vrot.lane.b32.xlu0 %v224, 112
    %v1042 = vpop.permute.xlu0 %1041
    %v1043 = vsel %vm308, %v1040, 0
    %v1045 = vsel %vm308, %v1042, 0
    %1047 = vmatprep.subr.mxu0 0.0
    %1048 = vmatpush1.xpose.msra.mxu0 0.0
    %1049 = vmatprep.subr.mxu0 0.0
    %1050 = vmatpush1.xpose.msra.mxu0 0.0
    %1051 = vmatprep.subr.mxu0 0.0
    %1052 = vmatpush1.xpose.msra.mxu0 0.0
    %1053 = vmatprep.subr.mxu0 0.0
    %1054 = vmatpush1.xpose.msra.mxu0 0.0
    %1055 = vmatprep.subr.mxu0 0.0
    %1056 = vmatpush1.xpose.msra.mxu0 0.0
    %1057 = vmatprep.subr.mxu0 0.0
    %1058 = vmatpush1.xpose.msra.mxu0 0.0
    %1059 = vmatprep.subr.mxu0 0.0
    %1060 = vmatpush1.xpose.msra.mxu0 0.0
    %1061 = vmatprep.subr.mxu0 0.0
    %1062 = vmatpush1.xpose.msra.mxu0 0.0
    %1063 = vmatprep.subr.mxu0 0.0
    %1064 = vmatpush1.xpose.msra.mxu0 0.0
    %1065 = vmatprep.subr.mxu0 0.0
    %1066 = vmatpush1.xpose.msra.mxu0 0.0
    %1067 = vmatprep.subr.mxu0 0.0
    %1068 = vmatpush1.xpose.msra.mxu0 0.0
    %1069 = vmatprep.subr.mxu0 0.0
    %1070 = vmatpush1.xpose.msra.mxu0 0.0
    %1071 = vmatprep.subr.mxu0 0.0
    %1072 = vmatpush1.xpose.msra.mxu0 0.0
    %1073 = vmatprep.subr.mxu0 0.0
    %1074 = vmatpush1.xpose.msra.mxu0 0.0
    %1075 = vmatprep.subr.mxu0 0.0
    %1076 = vmatpush1.xpose.msra.mxu0 0.0
    %1077 = vmatprep.subr.mxu0 0.0
    %1078 = vmatpush1.xpose.msra.mxu0 %v1045
    %1079 = vmatprep.subr.mxu0 0.0
    %1080 = vmatpush2.xpose.msra.mxu0 0.0
    %1081 = vmatprep.subr.mxu0 0.0
    %1082 = vmatpush2.xpose.msra.mxu0 0.0
    %1083 = vmatprep.subr.mxu0 0.0
    %1084 = vmatpush2.xpose.msra.mxu0 0.0
    %1085 = vmatprep.subr.mxu0 0.0
    %1086 = vmatpush2.xpose.msra.mxu0 0.0
    %1087 = vmatprep.subr.mxu0 0.0
    %1088 = vmatpush2.xpose.msra.mxu0 0.0
    %1089 = vmatprep.subr.mxu0 0.0
    %1090 = vmatpush2.xpose.msra.mxu0 0.0
    %1091 = vmatprep.subr.mxu0 0.0
    %1092 = vmatpush2.xpose.msra.mxu0 0.0
    %1093 = vmatprep.subr.mxu0 0.0
    %1094 = vmatpush2.xpose.msra.mxu0 0.0
    %1095 = vmatprep.subr.mxu0 0.0
    %1096 = vmatpush2.xpose.msra.mxu0 0.0
    %1097 = vmatprep.subr.mxu0 0.0
    %1098 = vmatpush2.xpose.msra.mxu0 0.0
    %1099 = vmatprep.subr.mxu0 0.0
    %1100 = vmatpush2.xpose.msra.mxu0 0.0
    %1101 = vmatprep.subr.mxu0 0.0
    %1102 = vmatpush2.xpose.msra.mxu0 0.0
    %1103 = vmatprep.subr.mxu0 0.0
    %1104 = vmatpush2.xpose.msra.mxu0 0.0
    %1105 = vmatprep.subr.mxu0 0.0
    %1106 = vmatpush2.xpose.msra.mxu0 0.0
    %1107 = vmatprep.subr.mxu0 0.0
    %1108 = vmatpush2.xpose.msra.mxu0 0.0
    %1109 = vmatprep.subr.mxu0 0.0
    %1110 = vmatpush2.xpose.msra.mxu0 0.0
    %1111 = vmatprep.mubr.f32.mxu0 0.0
    %1112 = vmatmul.mubr.f32.gmra.mxu0 %v1043
    %v1113 = vpop.f32.mrf.mxu0
    %v1114 = vadd.f32 0.0, %v1113
    %v1115 = vpop.f32.mrf.mxu0
    %1116 = vdwg.mxu0
    %v1117 = vsel %vm308, %v1036, -inf
    %1118 = vmax.xlane.f32.xlu0 %v1117
    %v1119 = vpop.xlane.xlu0 %1118
    %v1120 = vsel %vm308, %v1114, -inf
    %1121 = vmax.xlane.f32.xlu0 %v1120
    %v1122 = vpop.xlane.xlu0 %1121
    %v1123 = vsub.f32 %v1036, %v1119
    %v1124 = vsub.f32 %v1114, %v1122
    %v1125 = vmul.f32 %v1123, 1.442695
    %v1126 = vpow.pop %v1125
    %v1127 = vmul.f32 %v1124, 1.442695
    %v1128 = vpow.pop %v1127
    %v1129 = vsel %vm308, %v1126, 0.0
    %1130 = vadd.xlane.f32.xlu0 %v1129
    %v1131 = vpop.xlane.xlu0 %1130
    %v1132 = vsel %vm308, %v1128, 0.0
    %1133 = vadd.xlane.f32.xlu0 %v1132
    %v1134 = vpop.xlane.xlu0 %1133
    %v1135 = vrcp.pop %v1131
    %v1136 = vrcp.pop %v1134
    %v1137 = vmul.f32 %v1126, %v1135
    %v1138 = vmul.f32 %v1128, %v1136
    %1139 = vrot.lane.b32.xlu0 %v300, 112
    %v1140 = vpop.permute.xlu0 %1139
    %v1143 = vsel %vm308, %v1137, 0
    %1145 = vmatprep.subr.mxu0 0.0
    %1146 = vmatpush1.msra.mxu0 0.0
    %1147 = vmatprep.subr.mxu0 0.0
    %1148 = vmatpush1.msra.mxu0 0.0
    %1149 = vmatprep.subr.mxu0 0.0
    %1150 = vmatpush1.msra.mxu0 0.0
    %1151 = vmatprep.subr.mxu0 0.0
    %1152 = vmatpush1.msra.mxu0 0.0
    %1153 = vmatprep.subr.mxu0 0.0
    %1154 = vmatpush1.msra.mxu0 0.0
    %1155 = vmatprep.subr.mxu0 0.0
    %1156 = vmatpush1.msra.mxu0 0.0
    %1157 = vmatprep.subr.mxu0 0.0
    %1158 = vmatpush1.msra.mxu0 0.0
    %1159 = vmatprep.subr.mxu0 0.0
    %1160 = vmatpush1.msra.mxu0 0.0
    %1161 = vmatprep.subr.mxu0 0.0
    %1162 = vmatpush1.msra.mxu0 0.0
    %1163 = vmatprep.subr.mxu0 0.0
    %1164 = vmatpush1.msra.mxu0 0.0
    %1165 = vmatprep.subr.mxu0 0.0
    %1166 = vmatpush1.msra.mxu0 0.0
    %1167 = vmatprep.subr.mxu0 0.0
    %1168 = vmatpush1.msra.mxu0 0.0
    %1169 = vmatprep.subr.mxu0 0.0
    %1170 = vmatpush1.msra.mxu0 0.0
    %1171 = vmatprep.subr.mxu0 0.0
    %1172 = vmatpush1.msra.mxu0 0.0
    %1173 = vmatprep.subr.mxu0 0.0
    %1174 = vmatpush1.msra.mxu0 0.0
    %1175 = vmatprep.subr.mxu0 0.0
    %1176 = vmatpush1.msra.mxu0 %v1140
    %1177 = vmatprep.subr.mxu0 0.0
    %1178 = vmatpush2.msra.mxu0 0.0
    %1179 = vmatprep.subr.mxu0 0.0
    %1180 = vmatpush2.msra.mxu0 0.0
    %1181 = vmatprep.subr.mxu0 0.0
    %1182 = vmatpush2.msra.mxu0 0.0
    %1183 = vmatprep.subr.mxu0 0.0
    %1184 = vmatpush2.msra.mxu0 0.0
    %1185 = vmatprep.subr.mxu0 0.0
    %1186 = vmatpush2.msra.mxu0 0.0
    %1187 = vmatprep.subr.mxu0 0.0
    %1188 = vmatpush2.msra.mxu0 0.0
    %1189 = vmatprep.subr.mxu0 0.0
    %1190 = vmatpush2.msra.mxu0 0.0
    %1191 = vmatprep.subr.mxu0 0.0
    %1192 = vmatpush2.msra.mxu0 0.0
    %1193 = vmatprep.subr.mxu0 0.0
    %1194 = vmatpush2.msra.mxu0 0.0
    %1195 = vmatprep.subr.mxu0 0.0
    %1196 = vmatpush2.msra.mxu0 0.0
    %1197 = vmatprep.subr.mxu0 0.0
    %1198 = vmatpush2.msra.mxu0 0.0
    %1199 = vmatprep.subr.mxu0 0.0
    %1200 = vmatpush2.msra.mxu0 0.0
    %1201 = vmatprep.subr.mxu0 0.0
    %1202 = vmatpush2.msra.mxu0 0.0
    %1203 = vmatprep.subr.mxu0 0.0
    %1204 = vmatpush2.msra.mxu0 0.0
    %1205 = vmatprep.subr.mxu0 0.0
    %1206 = vmatpush2.msra.mxu0 0.0
    %1207 = vmatprep.subr.mxu0 0.0
    %1208 = vmatpush2.msra.mxu0 0.0
    %1209 = vmatprep.mubr.f32.mxu0 0.0
    %1210 = vmatmul.mubr.f32.gmra.mxu0 %v1143
    %v1211 = vpop.f32.mrf.mxu0
    %v1212 = vadd.f32 0.0, %v1211
    %v1213 = vpop.f32.mrf.mxu0
    %1214 = vdwg.mxu0
    %1215 = vrot.lane.b32.xlu0 %v305, 112
    %v1216 = vpop.permute.xlu0 %1215
    %v1219 = vsel %vm308, %v1138, 0
    %1221 = vmatprep.subr.mxu0 0.0
    %1222 = vmatpush1.msra.mxu0 0.0
    %1223 = vmatprep.subr.mxu0 0.0
    %1224 = vmatpush1.msra.mxu0 0.0
    %1225 = vmatprep.subr.mxu0 0.0
    %1226 = vmatpush1.msra.mxu0 0.0
    %1227 = vmatprep.subr.mxu0 0.0
    %1228 = vmatpush1.msra.mxu0 0.0
    %1229 = vmatprep.subr.mxu0 0.0
    %1230 = vmatpush1.msra.mxu0 0.0
    %1231 = vmatprep.subr.mxu0 0.0
    %1232 = vmatpush1.msra.mxu0 0.0
    %1233 = vmatprep.subr.mxu0 0.0
    %1234 = vmatpush1.msra.mxu0 0.0
    %1235 = vmatprep.subr.mxu0 0.0
    %1236 = vmatpush1.msra.mxu0 0.0
    %1237 = vmatprep.subr.mxu0 0.0
    %1238 = vmatpush1.msra.mxu0 0.0
    %1239 = vmatprep.subr.mxu0 0.0
    %1240 = vmatpush1.msra.mxu0 0.0
    %1241 = vmatprep.subr.mxu0 0.0
    %1242 = vmatpush1.msra.mxu0 0.0
    %1243 = vmatprep.subr.mxu0 0.0
    %1244 = vmatpush1.msra.mxu0 0.0
    %1245 = vmatprep.subr.mxu0 0.0
    %1246 = vmatpush1.msra.mxu0 0.0
    %1247 = vmatprep.subr.mxu0 0.0
    %1248 = vmatpush1.msra.mxu0 0.0
    %1249 = vmatprep.subr.mxu0 0.0
    %1250 = vmatpush1.msra.mxu0 0.0
    %1251 = vmatprep.subr.mxu0 0.0
    %1252 = vmatpush1.msra.mxu0 %v1216
    %1253 = vmatprep.subr.mxu0 0.0
    %1254 = vmatpush2.msra.mxu0 0.0
    %1255 = vmatprep.subr.mxu0 0.0
    %1256 = vmatpush2.msra.mxu0 0.0
    %1257 = vmatprep.subr.mxu0 0.0
    %1258 = vmatpush2.msra.mxu0 0.0
    %1259 = vmatprep.subr.mxu0 0.0
    %1260 = vmatpush2.msra.mxu0 0.0
    %1261 = vmatprep.subr.mxu0 0.0
    %1262 = vmatpush2.msra.mxu0 0.0
    %1263 = vmatprep.subr.mxu0 0.0
    %1264 = vmatpush2.msra.mxu0 0.0
    %1265 = vmatprep.subr.mxu0 0.0
    %1266 = vmatpush2.msra.mxu0 0.0
    %1267 = vmatprep.subr.mxu0 0.0
    %1268 = vmatpush2.msra.mxu0 0.0
    %1269 = vmatprep.subr.mxu0 0.0
    %1270 = vmatpush2.msra.mxu0 0.0
    %1271 = vmatprep.subr.mxu0 0.0
    %1272 = vmatpush2.msra.mxu0 0.0
    %1273 = vmatprep.subr.mxu0 0.0
    %1274 = vmatpush2.msra.mxu0 0.0
    %1275 = vmatprep.subr.mxu0 0.0
    %1276 = vmatpush2.msra.mxu0 0.0
    %1277 = vmatprep.subr.mxu0 0.0
    %1278 = vmatpush2.msra.mxu0 0.0
    %1279 = vmatprep.subr.mxu0 0.0
    %1280 = vmatpush2.msra.mxu0 0.0
    %1281 = vmatprep.subr.mxu0 0.0
    %1282 = vmatpush2.msra.mxu0 0.0
    %1283 = vmatprep.subr.mxu0 0.0
    %1284 = vmatpush2.msra.mxu0 0.0
    %1285 = vmatprep.mubr.f32.mxu0 0.0
    %1286 = vmatmul.mubr.f32.gmra.mxu0 %v1219
    %v1287 = vpop.f32.mrf.mxu0
    %v1288 = vadd.f32 0.0, %v1287
    %v1289 = vpop.f32.mrf.mxu0
    %1290 = vdwg.mxu0
    %1291 = vrot.lane.b32.xlu0 %v138, 104
    %v1292 = vpop.permute.xlu0 %1291
    %1293 = vrot.lane.b32.xlu0 %v219, 104
    %v1294 = vpop.permute.xlu0 %1293
    %v1295 = vsel %vm308, %v1292, 0
    %v1297 = vsel %vm308, %v1294, 0
    %1299 = vmatprep.subr.mxu0 0.0
    %1300 = vmatpush1.xpose.msra.mxu0 0.0
    %1301 = vmatprep.subr.mxu0 0.0
    %1302 = vmatpush1.xpose.msra.mxu0 0.0
    %1303 = vmatprep.subr.mxu0 0.0
    %1304 = vmatpush1.xpose.msra.mxu0 0.0
    %1305 = vmatprep.subr.mxu0 0.0
    %1306 = vmatpush1.xpose.msra.mxu0 0.0
    %1307 = vmatprep.subr.mxu0 0.0
    %1308 = vmatpush1.xpose.msra.mxu0 0.0
    %1309 = vmatprep.subr.mxu0 0.0
    %1310 = vmatpush1.xpose.msra.mxu0 0.0
    %1311 = vmatprep.subr.mxu0 0.0
    %1312 = vmatpush1.xpose.msra.mxu0 0.0
    %1313 = vmatprep.subr.mxu0 0.0
    %1314 = vmatpush1.xpose.msra.mxu0 0.0
    %1315 = vmatprep.subr.mxu0 0.0
    %1316 = vmatpush1.xpose.msra.mxu0 0.0
    %1317 = vmatprep.subr.mxu0 0.0
    %1318 = vmatpush1.xpose.msra.mxu0 0.0
    %1319 = vmatprep.subr.mxu0 0.0
    %1320 = vmatpush1.xpose.msra.mxu0 0.0
    %1321 = vmatprep.subr.mxu0 0.0
    %1322 = vmatpush1.xpose.msra.mxu0 0.0
    %1323 = vmatprep.subr.mxu0 0.0
    %1324 = vmatpush1.xpose.msra.mxu0 0.0
    %1325 = vmatprep.subr.mxu0 0.0
    %1326 = vmatpush1.xpose.msra.mxu0 0.0
    %1327 = vmatprep.subr.mxu0 0.0
    %1328 = vmatpush1.xpose.msra.mxu0 0.0
    %1329 = vmatprep.subr.mxu0 0.0
    %1330 = vmatpush1.xpose.msra.mxu0 %v1297
    %1331 = vmatprep.subr.mxu0 0.0
    %1332 = vmatpush2.xpose.msra.mxu0 0.0
    %1333 = vmatprep.subr.mxu0 0.0
    %1334 = vmatpush2.xpose.msra.mxu0 0.0
    %1335 = vmatprep.subr.mxu0 0.0
    %1336 = vmatpush2.xpose.msra.mxu0 0.0
    %1337 = vmatprep.subr.mxu0 0.0
    %1338 = vmatpush2.xpose.msra.mxu0 0.0
    %1339 = vmatprep.subr.mxu0 0.0
    %1340 = vmatpush2.xpose.msra.mxu0 0.0
    %1341 = vmatprep.subr.mxu0 0.0
    %1342 = vmatpush2.xpose.msra.mxu0 0.0
    %1343 = vmatprep.subr.mxu0 0.0
    %1344 = vmatpush2.xpose.msra.mxu0 0.0
    %1345 = vmatprep.subr.mxu0 0.0
    %1346 = vmatpush2.xpose.msra.mxu0 0.0
    %1347 = vmatprep.subr.mxu0 0.0
    %1348 = vmatpush2.xpose.msra.mxu0 0.0
    %1349 = vmatprep.subr.mxu0 0.0
    %1350 = vmatpush2.xpose.msra.mxu0 0.0
    %1351 = vmatprep.subr.mxu0 0.0
    %1352 = vmatpush2.xpose.msra.mxu0 0.0
    %1353 = vmatprep.subr.mxu0 0.0
    %1354 = vmatpush2.xpose.msra.mxu0 0.0
    %1355 = vmatprep.subr.mxu0 0.0
    %1356 = vmatpush2.xpose.msra.mxu0 0.0
    %1357 = vmatprep.subr.mxu0 0.0
    %1358 = vmatpush2.xpose.msra.mxu0 0.0
    %1359 = vmatprep.subr.mxu0 0.0
    %1360 = vmatpush2.xpose.msra.mxu0 0.0
    %1361 = vmatprep.subr.mxu0 0.0
    %1362 = vmatpush2.xpose.msra.mxu0 0.0
    %1363 = vmatprep.mubr.f32.mxu0 0.0
    %1364 = vmatmul.mubr.f32.gmra.mxu0 %v1295
    %v1365 = vpop.f32.mrf.mxu0
    %v1366 = vadd.f32 0.0, %v1365
    %v1367 = vpop.f32.mrf.mxu0
    %1368 = vdwg.mxu0
    %1369 = vrot.lane.b32.xlu0 %v143, 104
    %v1370 = vpop.permute.xlu0 %1369
    %1371 = vrot.lane.b32.xlu0 %v224, 104
    %v1372 = vpop.permute.xlu0 %1371
    %v1373 = vsel %vm308, %v1370, 0
    %v1375 = vsel %vm308, %v1372, 0
    %1377 = vmatprep.subr.mxu0 0.0
    %1378 = vmatpush1.xpose.msra.mxu0 0.0
    %1379 = vmatprep.subr.mxu0 0.0
    %1380 = vmatpush1.xpose.msra.mxu0 0.0
    %1381 = vmatprep.subr.mxu0 0.0
    %1382 = vmatpush1.xpose.msra.mxu0 0.0
    %1383 = vmatprep.subr.mxu0 0.0
    %1384 = vmatpush1.xpose.msra.mxu0 0.0
    %1385 = vmatprep.subr.mxu0 0.0
    %1386 = vmatpush1.xpose.msra.mxu0 0.0
    %1387 = vmatprep.subr.mxu0 0.0
    %1388 = vmatpush1.xpose.msra.mxu0 0.0
    %1389 = vmatprep.subr.mxu0 0.0
    %1390 = vmatpush1.xpose.msra.mxu0 0.0
    %1391 = vmatprep.subr.mxu0 0.0
    %1392 = vmatpush1.xpose.msra.mxu0 0.0
    %1393 = vmatprep.subr.mxu0 0.0
    %1394 = vmatpush1.xpose.msra.mxu0 0.0
    %1395 = vmatprep.subr.mxu0 0.0
    %1396 = vmatpush1.xpose.msra.mxu0 0.0
    %1397 = vmatprep.subr.mxu0 0.0
    %1398 = vmatpush1.xpose.msra.mxu0 0.0
    %1399 = vmatprep.subr.mxu0 0.0
    %1400 = vmatpush1.xpose.msra.mxu0 0.0
    %1401 = vmatprep.subr.mxu0 0.0
    %1402 = vmatpush1.xpose.msra.mxu0 0.0
    %1403 = vmatprep.subr.mxu0 0.0
    %1404 = vmatpush1.xpose.msra.mxu0 0.0
    %1405 = vmatprep.subr.mxu0 0.0
    %1406 = vmatpush1.xpose.msra.mxu0 0.0
    %1407 = vmatprep.subr.mxu0 0.0
    %1408 = vmatpush1.xpose.msra.mxu0 %v1375
    %1409 = vmatprep.subr.mxu0 0.0
    %1410 = vmatpush2.xpose.msra.mxu0 0.0
    %1411 = vmatprep.subr.mxu0 0.0
    %1412 = vmatpush2.xpose.msra.mxu0 0.0
    %1413 = vmatprep.subr.mxu0 0.0
    %1414 = vmatpush2.xpose.msra.mxu0 0.0
    %1415 = vmatprep.subr.mxu0 0.0
    %1416 = vmatpush2.xpose.msra.mxu0 0.0
    %1417 = vmatprep.subr.mxu0 0.0
    %1418 = vmatpush2.xpose.msra.mxu0 0.0
    %1419 = vmatprep.subr.mxu0 0.0
    %1420 = vmatpush2.xpose.msra.mxu0 0.0
    %1421 = vmatprep.subr.mxu0 0.0
    %1422 = vmatpush2.xpose.msra.mxu0 0.0
    %1423 = vmatprep.subr.mxu0 0.0
    %1424 = vmatpush2.xpose.msra.mxu0 0.0
    %1425 = vmatprep.subr.mxu0 0.0
    %1426 = vmatpush2.xpose.msra.mxu0 0.0
    %1427 = vmatprep.subr.mxu0 0.0
    %1428 = vmatpush2.xpose.msra.mxu0 0.0
    %1429 = vmatprep.subr.mxu0 0.0
    %1430 = vmatpush2.xpose.msra.mxu0 0.0
    %1431 = vmatprep.subr.mxu0 0.0
    %1432 = vmatpush2.xpose.msra.mxu0 0.0
    %1433 = vmatprep.subr.mxu0 0.0
    %1434 = vmatpush2.xpose.msra.mxu0 0.0
    %1435 = vmatprep.subr.mxu0 0.0
    %1436 = vmatpush2.xpose.msra.mxu0 0.0
    %1437 = vmatprep.subr.mxu0 0.0
    %1438 = vmatpush2.xpose.msra.mxu0 0.0
    %1439 = vmatprep.subr.mxu0 0.0
    %1440 = vmatpush2.xpose.msra.mxu0 0.0
    %1441 = vmatprep.mubr.f32.mxu0 0.0
    %1442 = vmatmul.mubr.f32.gmra.mxu0 %v1373
    %v1443 = vpop.f32.mrf.mxu0
    %v1444 = vadd.f32 0.0, %v1443
    %v1445 = vpop.f32.mrf.mxu0
    %1446 = vdwg.mxu0
    %v1447 = vsel %vm308, %v1366, -inf
    %1448 = vmax.xlane.f32.xlu0 %v1447
    %v1449 = vpop.xlane.xlu0 %1448
    %v1450 = vsel %vm308, %v1444, -inf
    %1451 = vmax.xlane.f32.xlu0 %v1450
    %v1452 = vpop.xlane.xlu0 %1451
    %v1453 = vsub.f32 %v1366, %v1449
    %v1454 = vsub.f32 %v1444, %v1452
    %v1455 = vmul.f32 %v1453, 1.442695
    %v1456 = vpow.pop %v1455
    %v1457 = vmul.f32 %v1454, 1.442695
    %v1458 = vpow.pop %v1457
    %v1459 = vsel %vm308, %v1456, 0.0
    %1460 = vadd.xlane.f32.xlu0 %v1459
    %v1461 = vpop.xlane.xlu0 %1460
    %v1462 = vsel %vm308, %v1458, 0.0
    %1463 = vadd.xlane.f32.xlu0 %v1462
    %v1464 = vpop.xlane.xlu0 %1463
    %v1465 = vrcp.pop %v1461
    %v1466 = vrcp.pop %v1464
    %v1467 = vmul.f32 %v1456, %v1465
    %v1468 = vmul.f32 %v1458, %v1466
    %1469 = vrot.lane.b32.xlu0 %v300, 104
    %v1470 = vpop.permute.xlu0 %1469
    %v1473 = vsel %vm308, %v1467, 0
    %1475 = vmatprep.subr.mxu0 0.0
    %1476 = vmatpush1.msra.mxu0 0.0
    %1477 = vmatprep.subr.mxu0 0.0
    %1478 = vmatpush1.msra.mxu0 0.0
    %1479 = vmatprep.subr.mxu0 0.0
    %1480 = vmatpush1.msra.mxu0 0.0
    %1481 = vmatprep.subr.mxu0 0.0
    %1482 = vmatpush1.msra.mxu0 0.0
    %1483 = vmatprep.subr.mxu0 0.0
    %1484 = vmatpush1.msra.mxu0 0.0
    %1485 = vmatprep.subr.mxu0 0.0
    %1486 = vmatpush1.msra.mxu0 0.0
    %1487 = vmatprep.subr.mxu0 0.0
    %1488 = vmatpush1.msra.mxu0 0.0
    %1489 = vmatprep.subr.mxu0 0.0
    %1490 = vmatpush1.msra.mxu0 0.0
    %1491 = vmatprep.subr.mxu0 0.0
    %1492 = vmatpush1.msra.mxu0 0.0
    %1493 = vmatprep.subr.mxu0 0.0
    %1494 = vmatpush1.msra.mxu0 0.0
    %1495 = vmatprep.subr.mxu0 0.0
    %1496 = vmatpush1.msra.mxu0 0.0
    %1497 = vmatprep.subr.mxu0 0.0
    %1498 = vmatpush1.msra.mxu0 0.0
    %1499 = vmatprep.subr.mxu0 0.0
    %1500 = vmatpush1.msra.mxu0 0.0
    %1501 = vmatprep.subr.mxu0 0.0
    %1502 = vmatpush1.msra.mxu0 0.0
    %1503 = vmatprep.subr.mxu0 0.0
    %1504 = vmatpush1.msra.mxu0 0.0
    %1505 = vmatprep.subr.mxu0 0.0
    %1506 = vmatpush1.msra.mxu0 %v1470
    %1507 = vmatprep.subr.mxu0 0.0
    %1508 = vmatpush2.msra.mxu0 0.0
    %1509 = vmatprep.subr.mxu0 0.0
    %1510 = vmatpush2.msra.mxu0 0.0
    %1511 = vmatprep.subr.mxu0 0.0
    %1512 = vmatpush2.msra.mxu0 0.0
    %1513 = vmatprep.subr.mxu0 0.0
    %1514 = vmatpush2.msra.mxu0 0.0
    %1515 = vmatprep.subr.mxu0 0.0
    %1516 = vmatpush2.msra.mxu0 0.0
    %1517 = vmatprep.subr.mxu0 0.0
    %1518 = vmatpush2.msra.mxu0 0.0
    %1519 = vmatprep.subr.mxu0 0.0
    %1520 = vmatpush2.msra.mxu0 0.0
    %1521 = vmatprep.subr.mxu0 0.0
    %1522 = vmatpush2.msra.mxu0 0.0
    %1523 = vmatprep.subr.mxu0 0.0
    %1524 = vmatpush2.msra.mxu0 0.0
    %1525 = vmatprep.subr.mxu0 0.0
    %1526 = vmatpush2.msra.mxu0 0.0
    %1527 = vmatprep.subr.mxu0 0.0
    %1528 = vmatpush2.msra.mxu0 0.0
    %1529 = vmatprep.subr.mxu0 0.0
    %1530 = vmatpush2.msra.mxu0 0.0
    %1531 = vmatprep.subr.mxu0 0.0
    %1532 = vmatpush2.msra.mxu0 0.0
    %1533 = vmatprep.subr.mxu0 0.0
    %1534 = vmatpush2.msra.mxu0 0.0
    %1535 = vmatprep.subr.mxu0 0.0
    %1536 = vmatpush2.msra.mxu0 0.0
    %1537 = vmatprep.subr.mxu0 0.0
    %1538 = vmatpush2.msra.mxu0 0.0
    %1539 = vmatprep.mubr.f32.mxu0 0.0
    %1540 = vmatmul.mubr.f32.gmra.mxu0 %v1473
    %v1541 = vpop.f32.mrf.mxu0
    %v1542 = vadd.f32 0.0, %v1541
    %v1543 = vpop.f32.mrf.mxu0
    %1544 = vdwg.mxu0
    %1545 = vrot.lane.b32.xlu0 %v305, 104
    %v1546 = vpop.permute.xlu0 %1545
    %v1549 = vsel %vm308, %v1468, 0
    %1551 = vmatprep.subr.mxu0 0.0
    %1552 = vmatpush1.msra.mxu0 0.0
    %1553 = vmatprep.subr.mxu0 0.0
    %1554 = vmatpush1.msra.mxu0 0.0
    %1555 = vmatprep.subr.mxu0 0.0
    %1556 = vmatpush1.msra.mxu0 0.0
    %1557 = vmatprep.subr.mxu0 0.0
    %1558 = vmatpush1.msra.mxu0 0.0
    %1559 = vmatprep.subr.mxu0 0.0
    %1560 = vmatpush1.msra.mxu0 0.0
    %1561 = vmatprep.subr.mxu0 0.0
    %1562 = vmatpush1.msra.mxu0 0.0
    %1563 = vmatprep.subr.mxu0 0.0
    %1564 = vmatpush1.msra.mxu0 0.0
    %1565 = vmatprep.subr.mxu0 0.0
    %1566 = vmatpush1.msra.mxu0 0.0
    %1567 = vmatprep.subr.mxu0 0.0
    %1568 = vmatpush1.msra.mxu0 0.0
    %1569 = vmatprep.subr.mxu0 0.0
    %1570 = vmatpush1.msra.mxu0 0.0
    %1571 = vmatprep.subr.mxu0 0.0
    %1572 = vmatpush1.msra.mxu0 0.0
    %1573 = vmatprep.subr.mxu0 0.0
    %1574 = vmatpush1.msra.mxu0 0.0
    %1575 = vmatprep.subr.mxu0 0.0
    %1576 = vmatpush1.msra.mxu0 0.0
    %1577 = vmatprep.subr.mxu0 0.0
    %1578 = vmatpush1.msra.mxu0 0.0
    %1579 = vmatprep.subr.mxu0 0.0
    %1580 = vmatpush1.msra.mxu0 0.0
    %1581 = vmatprep.subr.mxu0 0.0
    %1582 = vmatpush1.msra.mxu0 %v1546
    %1583 = vmatprep.subr.mxu0 0.0
    %1584 = vmatpush2.msra.mxu0 0.0
    %1585 = vmatprep.subr.mxu0 0.0
    %1586 = vmatpush2.msra.mxu0 0.0
    %1587 = vmatprep.subr.mxu0 0.0
    %1588 = vmatpush2.msra.mxu0 0.0
    %1589 = vmatprep.subr.mxu0 0.0
    %1590 = vmatpush2.msra.mxu0 0.0
    %1591 = vmatprep.subr.mxu0 0.0
    %1592 = vmatpush2.msra.mxu0 0.0
    %1593 = vmatprep.subr.mxu0 0.0
    %1594 = vmatpush2.msra.mxu0 0.0
    %1595 = vmatprep.subr.mxu0 0.0
    %1596 = vmatpush2.msra.mxu0 0.0
    %1597 = vmatprep.subr.mxu0 0.0
    %1598 = vmatpush2.msra.mxu0 0.0
    %1599 = vmatprep.subr.mxu0 0.0
    %1600 = vmatpush2.msra.mxu0 0.0
    %1601 = vmatprep.subr.mxu0 0.0
    %1602 = vmatpush2.msra.mxu0 0.0
    %1603 = vmatprep.subr.mxu0 0.0
    %1604 = vmatpush2.msra.mxu0 0.0
    %1605 = vmatprep.subr.mxu0 0.0
    %1606 = vmatpush2.msra.mxu0 0.0
    %1607 = vmatprep.subr.mxu0 0.0
    %1608 = vmatpush2.msra.mxu0 0.0
    %1609 = vmatprep.subr.mxu0 0.0
    %1610 = vmatpush2.msra.mxu0 0.0
    %1611 = vmatprep.subr.mxu0 0.0
    %1612 = vmatpush2.msra.mxu0 0.0
    %1613 = vmatprep.subr.mxu0 0.0
    %1614 = vmatpush2.msra.mxu0 0.0
    %1615 = vmatprep.mubr.f32.mxu0 0.0
    %1616 = vmatmul.mubr.f32.gmra.mxu0 %v1549
    %v1617 = vpop.f32.mrf.mxu0
    %v1618 = vadd.f32 0.0, %v1617
    %v1619 = vpop.f32.mrf.mxu0
    %1620 = vdwg.mxu0
    %1623 = vrot.lane.b32.xlu0 %v881, 8
    %v1624 = vpop.permute.xlu0 %1623
    %1625 = vrot.lane.b32.xlu0 %v958, 8
    %v1626 = vpop.permute.xlu0 %1625
    %1631 = vrot.lane.b32.xlu0 %v1212, 16
    %v1632 = vpop.permute.xlu0 %1631
    %1633 = vrot.lane.b32.xlu0 %v1288, 16
    %v1634 = vpop.permute.xlu0 %1633
    %1639 = vrot.lane.b32.xlu0 %v1542, 24
    %v1640 = vpop.permute.xlu0 %1639
    %1641 = vrot.lane.b32.xlu0 %v1618, 24
    %v1642 = vpop.permute.xlu0 %1641
    %v1645 = vsel %vm308, %v553, %v1624
    %v1646 = vsel %vm308, %v626, %v1626
    %vm1647 = vcmask 130048
    %v1648 = vsel %vm1647, %v1645, %v1632
    %v1649 = vsel %vm1647, %v1646, %v1634
    %vm1650 = vcmask 195584
    %v1651 = vsel %vm1650, %v1648, %v1640
    %v1652 = vsel %vm1650, %v1649, %v1642
    %v1653 = vlaneseq
    %v1654 = vshrl.u32 %v1653, 7
    %v1655 = vsub.s32 1, %v1654
    %v1656 = vrot.slane %v57, %v1655
    %v1658 = vsel %vm64, %v1651, 0
    %v1661 = vsel %vm64, %v1652, 0
    %1663 = vmatprep.subr.mxu0 0.0
    %1664 = vmatpush1.msra.mxu0 0.0
    %1665 = vmatprep.subr.mxu0 0.0
    %1666 = vmatpush1.msra.mxu0 0.0
    %1667 = vmatprep.subr.mxu0 0.0
    %1668 = vmatpush1.msra.mxu0 0.0
    %1669 = vmatprep.subr.mxu0 0.0
    %1670 = vmatpush1.msra.mxu0 0.0
    %1671 = vmatprep.subr.mxu0 0.0
    %1672 = vmatpush1.msra.mxu0 0.0
    %1673 = vmatprep.subr.mxu0 0.0
    %1674 = vmatpush1.msra.mxu0 0.0
    %1675 = vmatprep.subr.mxu0 0.0
    %1676 = vmatpush1.msra.mxu0 0.0
    %1677 = vmatprep.subr.mxu0 0.0
    %1678 = vmatpush1.msra.mxu0 0.0
    %1679 = vmatprep.subr.mxu0 0.0
    %1680 = vmatpush1.msra.mxu0 0.0
    %1681 = vmatprep.subr.mxu0 0.0
    %1682 = vmatpush1.msra.mxu0 0.0
    %1683 = vmatprep.subr.mxu0 0.0
    %1684 = vmatpush1.msra.mxu0 0.0
    %1685 = vmatprep.subr.mxu0 0.0
    %1686 = vmatpush1.msra.mxu0 0.0
    %1687 = vmatprep.subr.mxu0 0.0
    %1688 = vmatpush1.msra.mxu0 %v36
    %1689 = vmatprep.subr.mxu0 0.0
    %1690 = vmatpush1.msra.mxu0 %v35
    %1691 = vmatprep.subr.mxu0 0.0
    %1692 = vmatpush1.msra.mxu0 %v34
    %1693 = vmatprep.subr.mxu0 0.0
    %1694 = vmatpush1.msra.mxu0 %v33
    %1695 = vmatprep.subr.mxu0 0.0
    %1696 = vmatpush2.msra.mxu0 0.0
    %1697 = vmatprep.subr.mxu0 0.0
    %1698 = vmatpush2.msra.mxu0 0.0
    %1699 = vmatprep.subr.mxu0 0.0
    %1700 = vmatpush2.msra.mxu0 0.0
    %1701 = vmatprep.subr.mxu0 0.0
    %1702 = vmatpush2.msra.mxu0 0.0
    %1703 = vmatprep.subr.mxu0 0.0
    %1704 = vmatpush2.msra.mxu0 0.0
    %1705 = vmatprep.subr.mxu0 0.0
    %1706 = vmatpush2.msra.mxu0 0.0
    %1707 = vmatprep.subr.mxu0 0.0
    %1708 = vmatpush2.msra.mxu0 0.0
    %1709 = vmatprep.subr.mxu0 0.0
    %1710 = vmatpush2.msra.mxu0 0.0
    %1711 = vmatprep.subr.mxu0 0.0
    %1712 = vmatpush2.msra.mxu0 0.0
    %1713 = vmatprep.subr.mxu0 0.0
    %1714 = vmatpush2.msra.mxu0 0.0
    %1715 = vmatprep.subr.mxu0 0.0
    %1716 = vmatpush2.msra.mxu0 0.0
    %1717 = vmatprep.subr.mxu0 0.0
    %1718 = vmatpush2.msra.mxu0 0.0
    %1719 = vmatprep.subr.mxu0 0.0
    %1720 = vmatpush2.msra.mxu0 0.0
    %1721 = vmatprep.subr.mxu0 0.0
    %1722 = vmatpush2.msra.mxu0 0.0
    %1723 = vmatprep.subr.mxu0 0.0
    %1724 = vmatpush2.msra.mxu0 0.0
    %1725 = vmatprep.subr.mxu0 0.0
    %1726 = vmatpush2.msra.mxu0 0.0
    %1727 = vmatprep.mubr.f32.mxu0 0.0
    %1728 = vmatmul.mubr.f32.gmra.mxu0 %v1658
    %v1729 = vpop.f32.mrf.mxu0
    %v1730 = vadd.f32 %v1656, %v1729
    %v1731 = vpop.f32.mrf.mxu0
    %1732 = vmatprep.mubr.f32.mxu0 0.0
    %1733 = vmatmul.mubr.f32.gmra.mxu0 %v1661
    %v1734 = vpop.f32.mrf.mxu0
    %v1735 = vadd.f32 %v1656, %v1734
    %v1736 = vpop.f32.mrf.mxu0
    %1737 = vdwg.mxu0
    %v1738 = vadd.f32 %v1730, %v58
    %v1739 = vadd.f32 %v1735, %v59
    %v1740 = vsel %vm64, %v1738, 0.0
    %1741 = vadd.xlane.f32.xlu0 %v1740
    %v1742 = vpop.xlane.xlu0 %1741
    %v1743 = vsel %vm64, %v1739, 0.0
    %1744 = vadd.xlane.f32.xlu0 %v1743
    %v1745 = vpop.xlane.xlu0 %1744
    %v1746 = vrcp.pop 32.0
    %v1747 = vmul.f32 %v1742, %v1746
    %v1748 = vmul.f32 %v1745, %v1746
    %v1749 = vsub.f32 %v1738, %v1747
    %v1750 = vsub.f32 %v1739, %v1748
    %v1751 = vmul.f32 %v1749, %v1749
    %v1752 = vmul.f32 %v1750, %v1750
    %v1753 = vsel %vm64, %v1751, 0.0
    %1754 = vadd.xlane.f32.xlu0 %v1753
    %v1755 = vpop.xlane.xlu0 %1754
    %v1756 = vsel %vm64, %v1752, 0.0
    %1757 = vadd.xlane.f32.xlu0 %v1756
    %v1758 = vpop.xlane.xlu0 %1757
    %v1759 = vmul.f32 %v1755, %v1746
    %v1760 = vmul.f32 %v1758, %v1746
    %v1761 = vadd.f32 %v1759, 1e-05
    %v1762 = vadd.f32 %v1760, 1e-05
    %v1763 = vrsqrt.pop %v1761
    %v1764 = vrsqrt.pop %v1762
    %v1765 = vmul.f32 %v1749, %v1763
    %v1766 = vmul.f32 %v1750, %v1764
    %v1767 = vlaneseq
    %v1768 = vshrl.u32 %v1767, 7
    %v1769 = vsub.s32 2, %v1768
    %v1770 = vrot.slane %v57, %v1769
    %v1771 = vmul.f32 %v1765, %v1770
    %v1772 = vmul.f32 %v1766, %v1770
    %v1773 = vlaneseq
    %v1774 = vshrl.u32 %v1773, 7
    %v1775 = vsub.s32 3, %v1774
    %v1776 = vrot.slane %v57, %v1775
    %v1777 = vadd.f32 %v1771, %v1776
    %v1778 = vadd.f32 %v1772, %v1776
    %v1779 = vlaneseq
    %v1780 = vshrl.u32 %v1779, 7
    %v1781 = vsub.s32 0, %v1780
    %v1782 = vrot.slane %v57, %v1781
    %v1784 = vsel %vm64, %v1777, 0
    %v1787 = vsel %vm64, %v1778, 0
    %1789 = vmatprep.subr.mxu0 0.0
    %1790 = vmatpush1.msra.mxu0 0.0
    %1791 = vmatprep.subr.mxu0 0.0
    %1792 = vmatpush1.msra.mxu0 0.0
    %1793 = vmatprep.subr.mxu0 0.0
    %1794 = vmatpush1.msra.mxu0 0.0
    %1795 = vmatprep.subr.mxu0 0.0
    %1796 = vmatpush1.msra.mxu0 0.0
    %1797 = vmatprep.subr.mxu0 0.0
    %1798 = vmatpush1.msra.mxu0 0.0
    %1799 = vmatprep.subr.mxu0 0.0
    %1800 = vmatpush1.msra.mxu0 0.0
    %1801 = vmatprep.subr.mxu0 0.0
    %1802 = vmatpush1.msra.mxu0 0.0
    %1803 = vmatprep.subr.mxu0 0.0
    %1804 = vmatpush1.msra.mxu0 0.0
    %1805 = vmatprep.subr.mxu0 0.0
    %1806 = vmatpush1.msra.mxu0 0.0
    %1807 = vmatprep.subr.mxu0 0.0
    %1808 = vmatpush1.msra.mxu0 0.0
    %1809 = vmatprep.subr.mxu0 0.0
    %1810 = vmatpush1.msra.mxu0 0.0
    %1811 = vmatprep.subr.mxu0 0.0
    %1812 = vmatpush1.msra.mxu0 0.0
    %1813 = vmatprep.subr.mxu0 0.0
    %1814 = vmatpush1.msra.mxu0 %v56
    %1815 = vmatprep.subr.mxu0 0.0
    %1816 = vmatpush1.msra.mxu0 %v55
    %1817 = vmatprep.subr.mxu0 0.0
    %1818 = vmatpush1.msra.mxu0 %v54
    %1819 = vmatprep.subr.mxu0 0.0
    %1820 = vmatpush1.msra.mxu0 %v53
    %1821 = vmatprep.subr.mxu0 0.0
    %1822 = vmatpush2.msra.mxu0 0.0
    %1823 = vmatprep.subr.mxu0 0.0
    %1824 = vmatpush2.msra.mxu0 0.0
    %1825 = vmatprep.subr.mxu0 0.0
    %1826 = vmatpush2.msra.mxu0 0.0
    %1827 = vmatprep.subr.mxu0 0.0
    %1828 = vmatpush2.msra.mxu0 0.0
    %1829 = vmatprep.subr.mxu0 0.0
    %1830 = vmatpush2.msra.mxu0 0.0
    %1831 = vmatprep.subr.mxu0 0.0
    %1832 = vmatpush2.msra.mxu0 0.0
    %1833 = vmatprep.subr.mxu0 0.0
    %1834 = vmatpush2.msra.mxu0 0.0
    %1835 = vmatprep.subr.mxu0 0.0
    %1836 = vmatpush2.msra.mxu0 0.0
    %1837 = vmatprep.subr.mxu0 0.0
    %1838 = vmatpush2.msra.mxu0 0.0
    %1839 = vmatprep.subr.mxu0 0.0
    %1840 = vmatpush2.msra.mxu0 0.0
    %1841 = vmatprep.subr.mxu0 0.0
    %1842 = vmatpush2.msra.mxu0 0.0
    %1843 = vmatprep.subr.mxu0 0.0
    %1844 = vmatpush2.msra.mxu0 0.0
    %1845 = vmatprep.subr.mxu0 0.0
    %1846 = vmatpush2.msra.mxu0 0.0
    %1847 = vmatprep.subr.mxu0 0.0
    %1848 = vmatpush2.msra.mxu0 0.0
    %1849 = vmatprep.subr.mxu0 0.0
    %1850 = vmatpush2.msra.mxu0 0.0
    %1851 = vmatprep.subr.mxu0 0.0
    %1852 = vmatpush2.msra.mxu0 0.0
    %1853 = vmatprep.mubr.f32.mxu0 0.0
    %1854 = vmatmul.mubr.f32.gmra.mxu0 %v1784
    %v1855 = vpop.f32.mrf.mxu0
    %v1856 = vadd.f32 %v1782, %v1855
    %v1857 = vpop.f32.mrf.mxu0
    %1858 = vmatprep.mubr.f32.mxu0 0.0
    %1859 = vmatmul.mubr.f32.gmra.mxu0 %v1787
    %v1860 = vpop.f32.mrf.mxu0
    %v1861 = vadd.f32 %v1782, %v1860
    %v1862 = vpop.f32.mrf.mxu0
    %1863 = vdwg.mxu0
    %v1864 = vmax.f32 %v1856, 0.0
    %v1865 = vmax.f32 %v1861, 0.0
    %v1866 = vlaneseq
    %v1867 = vshrl.u32 %v1866, 7
    %v1868 = vsub.s32 6, %v1867
    %v1869 = vrot.slane %v57, %v1868
    %1870 = vmatprep.subr.mxu0 0.0
    %1871 = vmatpush1.msra.mxu0 %v52
    %1872 = vmatprep.subr.mxu0 0.0
    %1873 = vmatpush1.msra.mxu0 %v51
    %1874 = vmatprep.subr.mxu0 0.0
    %1875 = vmatpush1.msra.mxu0 %v50
    %1876 = vmatprep.subr.mxu0 0.0
    %1877 = vmatpush1.msra.mxu0 %v49
    %1878 = vmatprep.subr.mxu0 0.0
    %1879 = vmatpush1.msra.mxu0 %v48
    %1880 = vmatprep.subr.mxu0 0.0
    %1881 = vmatpush1.msra.mxu0 %v47
    %1882 = vmatprep.subr.mxu0 0.0
    %1883 = vmatpush1.msra.mxu0 %v46
    %1884 = vmatprep.subr.mxu0 0.0
    %1885 = vmatpush1.msra.mxu0 %v45
    %1886 = vmatprep.subr.mxu0 0.0
    %1887 = vmatpush1.msra.mxu0 %v44
    %1888 = vmatprep.subr.mxu0 0.0
    %1889 = vmatpush1.msra.mxu0 %v43
    %1890 = vmatprep.subr.mxu0 0.0
    %1891 = vmatpush1.msra.mxu0 %v42
    %1892 = vmatprep.subr.mxu0 0.0
    %1893 = vmatpush1.msra.mxu0 %v41
    %1894 = vmatprep.subr.mxu0 0.0
    %1895 = vmatpush1.msra.mxu0 %v40
    %1896 = vmatprep.subr.mxu0 0.0
    %1897 = vmatpush1.msra.mxu0 %v39
    %1898 = vmatprep.subr.mxu0 0.0
    %1899 = vmatpush1.msra.mxu0 %v38
    %1900 = vmatprep.subr.mxu0 0.0
    %1901 = vmatpush1.msra.mxu0 %v37
    %1902 = vmatprep.subr.mxu0 0.0
    %1903 = vmatpush2.msra.mxu0 0.0
    %1904 = vmatprep.subr.mxu0 0.0
    %1905 = vmatpush2.msra.mxu0 0.0
    %1906 = vmatprep.subr.mxu0 0.0
    %1907 = vmatpush2.msra.mxu0 0.0
    %1908 = vmatprep.subr.mxu0 0.0
    %1909 = vmatpush2.msra.mxu0 0.0
    %1910 = vmatprep.subr.mxu0 0.0
    %1911 = vmatpush2.msra.mxu0 0.0
    %1912 = vmatprep.subr.mxu0 0.0
    %1913 = vmatpush2.msra.mxu0 0.0
    %1914 = vmatprep.subr.mxu0 0.0
    %1915 = vmatpush2.msra.mxu0 0.0
    %1916 = vmatprep.subr.mxu0 0.0
    %1917 = vmatpush2.msra.mxu0 0.0
    %1918 = vmatprep.subr.mxu0 0.0
    %1919 = vmatpush2.msra.mxu0 0.0
    %1920 = vmatprep.subr.mxu0 0.0
    %1921 = vmatpush2.msra.mxu0 0.0
    %1922 = vmatprep.subr.mxu0 0.0
    %1923 = vmatpush2.msra.mxu0 0.0
    %1924 = vmatprep.subr.mxu0 0.0
    %1925 = vmatpush2.msra.mxu0 0.0
    %1926 = vmatprep.subr.mxu0 0.0
    %1927 = vmatpush2.msra.mxu0 0.0
    %1928 = vmatprep.subr.mxu0 0.0
    %1929 = vmatpush2.msra.mxu0 0.0
    %1930 = vmatprep.subr.mxu0 0.0
    %1931 = vmatpush2.msra.mxu0 0.0
    %1932 = vmatprep.subr.mxu0 0.0
    %1933 = vmatpush2.msra.mxu0 0.0
    %1934 = vmatprep.mubr.f32.mxu0 0.0
    %1935 = vmatmul.mubr.f32.gmra.mxu0 %v1864
    %v1936 = vpop.f32.mrf.mxu0
    %v1937 = vadd.f32 %v1869, %v1936
    %v1938 = vpop.f32.mrf.mxu0
    %1939 = vmatprep.mubr.f32.mxu0 0.0
    %1940 = vmatmul.mubr.f32.gmra.mxu0 %v1865
    %v1941 = vpop.f32.mrf.mxu0
    %v1942 = vadd.f32 %v1869, %v1941
    %v1943 = vpop.f32.mrf.mxu0
    %1944 = vdwg.mxu0
    %v1945 = vadd.f32 %v1937, %v1777
    %v1946 = vadd.f32 %v1942, %v1778
    %v1947 = vsel %vm64, %v1945, 0.0
    %1948 = vadd.xlane.f32.xlu0 %v1947
    %v1949 = vpop.xlane.xlu0 %1948
    %v1950 = vsel %vm64, %v1946, 0.0
    %1951 = vadd.xlane.f32.xlu0 %v1950
    %v1952 = vpop.xlane.xlu0 %1951
    %v1953 = vmul.f32 %v1949, %v1746
    %v1954 = vmul.f32 %v1952, %v1746
    %v1955 = vsub.f32 %v1945, %v1953
    %v1956 = vsub.f32 %v1946, %v1954
    %v1957 = vmul.f32 %v1955, %v1955
    %v1958 = vmul.f32 %v1956, %v1956
    %v1959 = vsel %vm64, %v1957, 0.0
    %1960 = vadd.xlane.f32.xlu0 %v1959
    %v1961 = vpop.xlane.xlu0 %1960
    %v1962 = vsel %vm64, %v1958, 0.0
    %1963 = vadd.xlane.f32.xlu0 %v1962
    %v1964 = vpop.xlane.xlu0 %1963
    %v1965 = vmul.f32 %v1961, %v1746
    %v1966 = vmul.f32 %v1964, %v1746
    %v1967 = vadd.f32 %v1965, 1e-05
    %v1968 = vadd.f32 %v1966, 1e-05
    %v1969 = vrsqrt.pop %v1967
    %v1970 = vrsqrt.pop %v1968
    %v1971 = vmul.f32 %v1955, %v1969
    %v1972 = vmul.f32 %v1956, %v1970
    %v1973 = vlaneseq
    %v1974 = vshrl.u32 %v1973, 7
    %v1975 = vsub.s32 4, %v1974
    %v1976 = vrot.slane %v57, %v1975
    %v1977 = vmul.f32 %v1971, %v1976
    %v1978 = vmul.f32 %v1972, %v1976
    %v1979 = vlaneseq
    %v1980 = vshrl.u32 %v1979, 7
    %v1981 = vsub.s32 5, %v1980
    %v1982 = vrot.slane %v57, %v1981
    %v1983 = vadd.f32 %v1977, %v1982
    %v1984 = vadd.f32 %v1978, %v1982
    %1985 = vst.msk [vmem:[#allocation2] sm:$0xff] %vm64, %v1983
    %1986 = vst.msk [vmem:[#allocation2 + $0x8] sm:$0xff] %vm64, %v1984
    // Predicated region
    $region22: #{transformer_block.1} parent=1 // pred_check
      _
    $region23: #{transformer_block.1} parent=1 // pred_check_branch
      %1988 = sbr.rel (0) target = $region25
    $region24: #{transformer_block.1} parent=1 // pred_region
      %s1990 = ssub.s32 256, 256
      %1991 = vsyncadd [#allocation3], %s1990
      %s1992 = sshll.u32 [#allocation2], 4
      %s1993 = int_to_ptr.vmem [resolvable:$true] %s1992
      %1998 = dma.vmem_to_hbm [thread:$0]  %s1993, 256, %s5, [#allocation3], 128, 128, 8
    $region25: #{transformer_block.1} parent=1 // pred_fallthru
      _
    // Predicated region
    $region26: #{transformer_block.1} parent=1 // pred_check
      _
    $region27: #{transformer_block.1} parent=1 // pred_check_branch
      %2000 = sbr.rel (0) target = $region29
    $region28: #{transformer_block.1} parent=1 // pred_region
      %2001 = dma.done [#allocation3], 256
    $region29: #{transformer_block.1} parent=1 // pred_fallthru
      _
    %2002 = vsyncpa [#allocation3], 1

</llo_original>
